<compile_context>
chip_gen: v6e
topology: v6e:2x2x1
jax: 0.10.0
libtpu: 0.0.40
codegen_flags: <defaults>
</compile_context>

<pallas_src>
import functools

import jax
import jax.numpy as jnp
from jax.experimental import pallas as pl
from jax.experimental.pallas import tpu as pltpu

LANE = 128                 # TPU lane width (last-dim tile)
SUBLANE = 8                # sublane granularity (second-last dim)
MAX_SINGLE_TILE_B = 1024   # small batches -> single grid step
DEFAULT_TILE_B = 256       # batch tile for large batches (2 MXU M-passes/step)


def _round_up(n, m):
    return ((n + m - 1) // m) * m


def _pad2(a, rows, cols):
    return jnp.pad(a, ((0, rows - a.shape[0]), (0, cols - a.shape[1])))


def _mlp_kernel(x_ref,
                w1_ref, b1_ref,
                w2_ref, b2_ref,
                w3_ref, b3_ref,
                w4_ref, b4_ref,
                o_ref, *, approx_sigmoid):
    """3x (Linear + ReLU) then Linear + sigmoid on one batch tile.

    Matmuls run on the MXU with f32 accumulation; bias-add / ReLU / sigmoid
    stay in f32 on the VPU/EUP.
    """
    cd = w1_ref.dtype  # MXU operand dtype (f32 or bf16)

    h = jnp.dot(x_ref[...].astype(cd), w1_ref[...],
                preferred_element_type=jnp.float32) + b1_ref[...]
    h = jnp.maximum(h, 0.0)

    h = jnp.dot(h.astype(cd), w2_ref[...],
                preferred_element_type=jnp.float32) + b2_ref[...]
    h = jnp.maximum(h, 0.0)

    h = jnp.dot(h.astype(cd), w3_ref[...],
                preferred_element_type=jnp.float32) + b3_ref[...]
    h = jnp.maximum(h, 0.0)

    logits = jnp.dot(h.astype(cd), w4_ref[...],
                     preferred_element_type=jnp.float32) + b4_ref[...]

    denom = 1.0 + jnp.exp(-logits)                        # exp on the EUP
    if approx_sigmoid:
        o_ref[...] = pl.reciprocal(denom, approx=True)    # EUP vrcp, frees VALU
    else:
        o_ref[...] = 1.0 / denom                          # exact f32 divide


def logistic_regression_forward(x, params, *, tile_b=None,
                                matmul_dtype=jnp.float32,
                                approx_sigmoid=False):
    """params: dict with w1..w4 laid out (in, out) and b1..b4 shaped (1, out)."""
    B, in_size = x.shape
    h1 = params["w1"].shape[1]
    h2 = params["w2"].shape[1]
    h3 = params["w3"].shape[1]
    assert params["w3"].shape[0] == h3 and h2 == h3, (
        "Module forward only works when hidden_size2 == hidden_size3")

    # Padded, MXU/lane-friendly problem sizes.
    in_p = _round_up(in_size, LANE)
    h1_p = _round_up(h1, LANE)
    h2_p = _round_up(h2, LANE)
    out_p = LANE                       # lane-dense output (N=1 -> N=128)

    # Adaptive batch tiling: single step for small batches, 256-row tiles else.
    if tile_b is None:
        if B <= MAX_SINGLE_TILE_B:
            tile_b = _round_up(max(B, 1), SUBLANE)
        else:
            tile_b = DEFAULT_TILE_B
    b_p = _round_up(max(B, 1), tile_b)

    x_p = _pad2(x, b_p, in_p).astype(matmul_dtype)
    w1_p = _pad2(params["w1"], in_p, h1_p).astype(matmul_dtype)
    w2_p = _pad2(params["w2"], h1_p, h2_p).astype(matmul_dtype)
    w3_p = _pad2(params["w3"], h2_p, h2_p).astype(matmul_dtype)
    w4_p = _pad2(params["w4"], h2_p, out_p).astype(matmul_dtype)
    b1_p = _pad2(params["b1"], 1, h1_p).astype(jnp.float32)
    b2_p = _pad2(params["b2"], 1, h2_p).astype(jnp.float32)
    b3_p = _pad2(params["b3"], 1, h2_p).astype(jnp.float32)
    b4_p = _pad2(params["b4"], 1, out_p).astype(jnp.float32)

    grid = (b_p // tile_b,)

    def resident(shape):
        # Same block index every grid step -> weight/bias stays resident in VMEM.
        return pl.BlockSpec(shape, lambda i: (0, 0))

    kernel = functools.partial(_mlp_kernel, approx_sigmoid=approx_sigmoid)

    out_padded = pl.pallas_call(
        kernel,
        out_shape=jax.ShapeDtypeStruct((b_p, out_p), jnp.float32),
        grid=grid,
        in_specs=[
            pl.BlockSpec((tile_b, in_p), lambda i: (i, 0)),   # x: tiled over batch
            resident((in_p, h1_p)), resident((1, h1_p)),      # w1, b1
            resident((h1_p, h2_p)), resident((1, h2_p)),      # w2, b2
            resident((h2_p, h2_p)), resident((1, h2_p)),      # w3, b3
            resident((h2_p, out_p)), resident((1, out_p)),    # w4, b4 (padded to 128 lanes)
        ],
        out_specs=pl.BlockSpec((tile_b, out_p), lambda i: (i, 0)),
        compiler_params=pltpu.CompilerParams(
            dimension_semantics=("parallel",)),
    )(x_p, w1_p, b1_p, w2_p, b2_p, w3_p, b3_p, w4_p, b4_p)

    # Valid rows, logit lane 0 only.
    return out_padded[:B, :1]


def init_params(key, input_size, hidden_size1, hidden_size2, hidden_size3):
    """Deterministic synthetic init mimicking nn.Linear's U(-1/sqrt(in), 1/sqrt(in))."""
    assert hidden_size2 == hidden_size3, (
        "Module forward only works when hidden_size2 == hidden_size3")

    def linear(key, fan_in, fan_out):
        kw, kb = jax.random.split(key)
        bound = 1.0 / jnp.sqrt(float(fan_in))
        w = jax.random.uniform(kw, (fan_in, fan_out), jnp.float32, -bound, bound)
        b = jax.random.uniform(kb, (1, fan_out), jnp.float32, -bound, bound)
        return w, b

    k1, k2, k3, k4 = jax.random.split(key, 4)
    w1, b1 = linear(k1, input_size, hidden_size1)
    w2, b2 = linear(k2, hidden_size1, hidden_size2)
    w3, b3 = linear(k3, hidden_size3, hidden_size3)   # square layer, as in the module
    w4, b4 = linear(k4, hidden_size2, 1)
    return dict(w1=w1, b1=b1, w2=w2, b2=b2, w3=w3, b3=b3, w4=w4, b4=b4)


def reference_forward(x, p):
    h = jnp.maximum(x @ p["w1"] + p["b1"], 0.0)
    h = jnp.maximum(h @ p["w2"] + p["b2"], 0.0)
    h = jnp.maximum(h @ p["w3"] + p["b3"], 0.0)
    return jax.nn.sigmoid(h @ p["w4"] + p["b4"])


if __name__ == "__main__":
    key = jax.random.PRNGKey(0)
    kx, kp = jax.random.split(key)

    # Module-consistent small sizes.
    input_size = 32
    hidden_size1 = 32
    hidden_size2 = 32
    hidden_size3 = 32   # must equal hidden_size2 for the forward to be well-formed

    # Case 1: small ragged batch -> single grid step (adaptive tile).
    batch = 300
    x = jax.random.normal(kx, (batch, input_size), jnp.float32)
    params = init_params(kp, input_size, hidden_size1, hidden_size2, hidden_size3)
    ref = reference_forward(x, params)

    fwd_f32 = jax.jit(functools.partial(logistic_regression_forward,
                                        matmul_dtype=jnp.float32,
                                        approx_sigmoid=False))
    out = jax.block_until_ready(fwd_f32(x, params))
    assert out.shape == (batch, 1), out.shape
    assert jnp.allclose(out, ref, atol=1e-5, rtol=1e-5), "f32 mismatch vs JAX reference"

    # bf16 MXU path (v6e/v7x-style) with EUP approximate reciprocal — looser tolerance.
    fwd_bf16 = jax.jit(functools.partial(logistic_regression_forward,
                                         matmul_dtype=jnp.bfloat16,
                                         approx_sigmoid=True))
    out_bf16 = jax.block_until_ready(fwd_bf16(x, params))
    assert out_bf16.shape == (batch, 1), out_bf16.shape
    assert jnp.allclose(out_bf16, ref, atol=2e-2), "bf16 mismatch vs JAX reference"

    # Case 2: larger batch -> multi-step grid (256-row tiles) with ragged tail.
    batch2 = 1500
    x2 = jax.random.normal(jax.random.PRNGKey(7), (batch2, input_size), jnp.float32)
    ref2 = reference_forward(x2, params)
    out2 = jax.block_until_ready(fwd_f32(x2, params))
    assert out2.shape == (batch2, 1), out2.shape
    assert jnp.allclose(out2, ref2, atol=1e-5, rtol=1e-5), "multi-tile mismatch"

    print("KERNEL_OK")
</pallas_src>

<mosaic_0001>
module attributes {stable_mosaic.version = 11 : i64} {
  func.func @_mlp_kernel(%arg0: i32, %arg1: memref<304x128xf32, #tpu.memory_space<vmem>>, %arg2: memref<128x128xf32, #tpu.memory_space<vmem>>, %arg3: memref<1x128xf32, #tpu.memory_space<vmem>>, %arg4: memref<128x128xf32, #tpu.memory_space<vmem>>, %arg5: memref<1x128xf32, #tpu.memory_space<vmem>>, %arg6: memref<128x128xf32, #tpu.memory_space<vmem>>, %arg7: memref<1x128xf32, #tpu.memory_space<vmem>>, %arg8: memref<128x128xf32, #tpu.memory_space<vmem>>, %arg9: memref<1x128xf32, #tpu.memory_space<vmem>>, %arg10: memref<304x128xf32, #tpu.memory_space<vmem>>) attributes {dimension_semantics = [#tpu.dimension_semantics<parallel>], iteration_bounds = array<i64: 1>, scalar_prefetch = 0 : i64, scratch_operands = 0 : i64, tpu.core_type = #tpu.core_type<tc>, window_params = [{transform_indices = @transform_0, window_bounds = array<i64: 304, 128>}, {pipeline_mode = #tpu.pipeline_mode<synchronous>, transform_indices = @transform_1, window_bounds = array<i64: 128, 128>}, {pipeline_mode = #tpu.pipeline_mode<synchronous>, transform_indices = @transform_2, window_bounds = array<i64: 1, 128>}, {pipeline_mode = #tpu.pipeline_mode<synchronous>, transform_indices = @transform_3, window_bounds = array<i64: 128, 128>}, {pipeline_mode = #tpu.pipeline_mode<synchronous>, transform_indices = @transform_4, window_bounds = array<i64: 1, 128>}, {pipeline_mode = #tpu.pipeline_mode<synchronous>, transform_indices = @transform_5, window_bounds = array<i64: 128, 128>}, {pipeline_mode = #tpu.pipeline_mode<synchronous>, transform_indices = @transform_6, window_bounds = array<i64: 1, 128>}, {pipeline_mode = #tpu.pipeline_mode<synchronous>, transform_indices = @transform_7, window_bounds = array<i64: 128, 128>}, {pipeline_mode = #tpu.pipeline_mode<synchronous>, transform_indices = @transform_8, window_bounds = array<i64: 1, 128>}, {transform_indices = @transform_9, window_bounds = array<i64: 304, 128>}]} {
    %c0 = arith.constant 0 : index
    %c0_0 = arith.constant 0 : index
    %0 = vector.load %arg1[%c0, %c0_0] : memref<304x128xf32, #tpu.memory_space<vmem>>, vector<304x128xf32>
    %c0_1 = arith.constant 0 : index
    %c0_2 = arith.constant 0 : index
    %1 = vector.load %arg2[%c0_1, %c0_2] : memref<128x128xf32, #tpu.memory_space<vmem>>, vector<128x128xf32>
    %cst = arith.constant dense<0.000000e+00> : vector<304x128xf32>
    %2 = tpu.matmul %0, %1, %cst {dimension_numbers = #tpu.dot_dimension_numbers<[1], [0], [0], [1], [0, 0, 1, 1], [], []>} : vector<304x128xf32>, vector<128x128xf32>, vector<304x128xf32> -> vector<304x128xf32>
    %c0_3 = arith.constant 0 : index
    %c0_4 = arith.constant 0 : index
    %3 = vector.load %arg3[%c0_3, %c0_4] : memref<1x128xf32, #tpu.memory_space<vmem>>, vector<1x128xf32>
    %4 = vector.broadcast %3 : vector<1x128xf32> to vector<304x128xf32>
    %5 = arith.addf %2, %4 : vector<304x128xf32>
    %cst_5 = arith.constant 0.000000e+00 : f32
    %6 = vector.broadcast %cst_5 : f32 to vector<304x128xf32>
    %7 = arith.maximumf %5, %6 : vector<304x128xf32>
    %c0_6 = arith.constant 0 : index
    %c0_7 = arith.constant 0 : index
    %8 = vector.load %arg4[%c0_6, %c0_7] : memref<128x128xf32, #tpu.memory_space<vmem>>, vector<128x128xf32>
    %cst_8 = arith.constant dense<0.000000e+00> : vector<304x128xf32>
    %9 = tpu.matmul %7, %8, %cst_8 {dimension_numbers = #tpu.dot_dimension_numbers<[1], [0], [0], [1], [0, 0, 1, 1], [], []>} : vector<304x128xf32>, vector<128x128xf32>, vector<304x128xf32> -> vector<304x128xf32>
    %c0_9 = arith.constant 0 : index
    %c0_10 = arith.constant 0 : index
    %10 = vector.load %arg5[%c0_9, %c0_10] : memref<1x128xf32, #tpu.memory_space<vmem>>, vector<1x128xf32>
    %11 = vector.broadcast %10 : vector<1x128xf32> to vector<304x128xf32>
    %12 = arith.addf %9, %11 : vector<304x128xf32>
    %cst_11 = arith.constant 0.000000e+00 : f32
    %13 = vector.broadcast %cst_11 : f32 to vector<304x128xf32>
    %14 = arith.maximumf %12, %13 : vector<304x128xf32>
    %c0_12 = arith.constant 0 : index
    %c0_13 = arith.constant 0 : index
    %15 = vector.load %arg6[%c0_12, %c0_13] : memref<128x128xf32, #tpu.memory_space<vmem>>, vector<128x128xf32>
    %cst_14 = arith.constant dense<0.000000e+00> : vector<304x128xf32>
    %16 = tpu.matmul %14, %15, %cst_14 {dimension_numbers = #tpu.dot_dimension_numbers<[1], [0], [0], [1], [0, 0, 1, 1], [], []>} : vector<304x128xf32>, vector<128x128xf32>, vector<304x128xf32> -> vector<304x128xf32>
    %c0_15 = arith.constant 0 : index
    %c0_16 = arith.constant 0 : index
    %17 = vector.load %arg7[%c0_15, %c0_16] : memref<1x128xf32, #tpu.memory_space<vmem>>, vector<1x128xf32>
    %18 = vector.broadcast %17 : vector<1x128xf32> to vector<304x128xf32>
    %19 = arith.addf %16, %18 : vector<304x128xf32>
    %cst_17 = arith.constant 0.000000e+00 : f32
    %20 = vector.broadcast %cst_17 : f32 to vector<304x128xf32>
    %21 = arith.maximumf %19, %20 : vector<304x128xf32>
    %c0_18 = arith.constant 0 : index
    %c0_19 = arith.constant 0 : index
    %22 = vector.load %arg8[%c0_18, %c0_19] : memref<128x128xf32, #tpu.memory_space<vmem>>, vector<128x128xf32>
    %cst_20 = arith.constant dense<0.000000e+00> : vector<304x128xf32>
    %23 = tpu.matmul %21, %22, %cst_20 {dimension_numbers = #tpu.dot_dimension_numbers<[1], [0], [0], [1], [0, 0, 1, 1], [], []>} : vector<304x128xf32>, vector<128x128xf32>, vector<304x128xf32> -> vector<304x128xf32>
    %c0_21 = arith.constant 0 : index
    %c0_22 = arith.constant 0 : index
    %24 = vector.load %arg9[%c0_21, %c0_22] : memref<1x128xf32, #tpu.memory_space<vmem>>, vector<1x128xf32>
    %25 = vector.broadcast %24 : vector<1x128xf32> to vector<304x128xf32>
    %26 = arith.addf %23, %25 : vector<304x128xf32>
    %cst_23 = arith.constant 0.000000e+00 : f32
    %27 = vector.broadcast %cst_23 : f32 to vector<304x128xf32>
    %28 = arith.subf %27, %26 : vector<304x128xf32>
    %29 = math.exp %28 : vector<304x128xf32>
    %cst_24 = arith.constant 1.000000e+00 : f32
    %30 = vector.broadcast %cst_24 : f32 to vector<304x128xf32>
    %31 = arith.addf %30, %29 : vector<304x128xf32>
    %cst_25 = arith.constant 1.000000e+00 : f32
    %32 = vector.broadcast %cst_25 : f32 to vector<304x128xf32>
    %33 = arith.divf %32, %31 : vector<304x128xf32>
    %c0_26 = arith.constant 0 : index
    %c0_27 = arith.constant 0 : index
    %34 = vector.load %arg10[%c0_26, %c0_27] : memref<304x128xf32, #tpu.memory_space<vmem>>, vector<304x128xf32>
    tpu.vector_store %arg10[%c0_26, %c0_27], %33 {strides = array<i32>} : memref<304x128xf32, #tpu.memory_space<vmem>>, vector<304x128xf32>,
    return
  }
  func.func @transform_0(%arg0: i32) -> (i32, i32) {
    %c0_i32 = arith.constant 0 : i32
    %c0_i32_0 = arith.constant 0 : i32
    return %arg0, %c0_i32 : i32, i32
  }
  func.func @transform_1(%arg0: i32) -> (i32, i32) {
    %c0_i32 = arith.constant 0 : i32
    %c0_i32_0 = arith.constant 0 : i32
    %c0_i32_1 = arith.constant 0 : i32
    return %c0_i32, %c0_i32_0 : i32, i32
  }
  func.func @transform_2(%arg0: i32) -> (i32, i32) {
    %c0_i32 = arith.constant 0 : i32
    %c0_i32_0 = arith.constant 0 : i32
    %c0_i32_1 = arith.constant 0 : i32
    return %c0_i32, %c0_i32_0 : i32, i32
  }
  func.func @transform_3(%arg0: i32) -> (i32, i32) {
    %c0_i32 = arith.constant 0 : i32
    %c0_i32_0 = arith.constant 0 : i32
    %c0_i32_1 = arith.constant 0 : i32
    return %c0_i32, %c0_i32_0 : i32, i32
  }
  func.func @transform_4(%arg0: i32) -> (i32, i32) {
    %c0_i32 = arith.constant 0 : i32
    %c0_i32_0 = arith.constant 0 : i32
    %c0_i32_1 = arith.constant 0 : i32
    return %c0_i32, %c0_i32_0 : i32, i32
  }
  func.func @transform_5(%arg0: i32) -> (i32, i32) {
    %c0_i32 = arith.constant 0 : i32
    %c0_i32_0 = arith.constant 0 : i32
    %c0_i32_1 = arith.constant 0 : i32
    return %c0_i32, %c0_i32_0 : i32, i32
  }
  func.func @transform_6(%arg0: i32) -> (i32, i32) {
    %c0_i32 = arith.constant 0 : i32
    %c0_i32_0 = arith.constant 0 : i32
    %c0_i32_1 = arith.constant 0 : i32
    return %c0_i32, %c0_i32_0 : i32, i32
  }
  func.func @transform_7(%arg0: i32) -> (i32, i32) {
    %c0_i32 = arith.constant 0 : i32
    %c0_i32_0 = arith.constant 0 : i32
    %c0_i32_1 = arith.constant 0 : i32
    return %c0_i32, %c0_i32_0 : i32, i32
  }
  func.func @transform_8(%arg0: i32) -> (i32, i32) {
    %c0_i32 = arith.constant 0 : i32
    %c0_i32_0 = arith.constant 0 : i32
    %c0_i32_1 = arith.constant 0 : i32
    return %c0_i32, %c0_i32_0 : i32, i32
  }
  func.func @transform_9(%arg0: i32) -> (i32, i32) {
    %c0_i32 = arith.constant 0 : i32
    %c0_i32_0 = arith.constant 0 : i32
    return %arg0, %c0_i32 : i32, i32
  }
}

</mosaic_0001>

<llo_original>
// kernel: logistic_regression_forward.1
$region0: #{logistic_regression_forward.1}
  #allocation0 [shape = 'u32[]', space=smem, size = 0x4, offset = 0x4, fixed_abs, tag = 'smem constant byte address 0x4 - core index']
  #allocation1 [shape = 'u32[144,128]{1,0:T(1,128)}', space=vmem, size = 0x12000, scoped, tag = 'internal scratch']
  %s0 = inlined_call_operand.vmem [shape: f32[304,128], index: 0, kind: input, shape index: {}]
  %s1 = inlined_call_operand.vmem [shape: f32[128,128], index: 1, kind: input, shape index: {}]
  %s2 = inlined_call_operand.vmem [shape: f32[1,128], index: 2, kind: input, shape index: {}]
  %s3 = inlined_call_operand.vmem [shape: f32[128,128], index: 3, kind: input, shape index: {}]
  %s4 = inlined_call_operand.vmem [shape: f32[1,128], index: 4, kind: input, shape index: {}]
  %s5 = inlined_call_operand.vmem [shape: f32[128,128], index: 5, kind: input, shape index: {}]
  %s6 = inlined_call_operand.vmem [shape: f32[1,128], index: 6, kind: input, shape index: {}]
  %s7 = inlined_call_operand.vmem [shape: f32[128,128], index: 7, kind: input, shape index: {}]
  %s8 = inlined_call_operand.vmem [shape: f32[1,128], index: 8, kind: input, shape index: {}]
  %s9 = inlined_call_operand.vmem [shape: f32[304,128], index: 9, kind: output, shape index: {}]
  %s10 = sld [smem:[#allocation0]]
  $region46: #{logistic_regression_forward.1} parent=0
    _
  %s12 = ssub.s32 1, %s10
  %s13 = scalar_select 0, %s12, %s10
  // Predicated region
  $region2: #{logistic_regression_forward.1} parent=0 // pred_check
    _
  $region3: #{logistic_regression_forward.1} parent=0 // pred_check_branch
    %15 = sbr.rel (0) target = $region5
  $region4: #{logistic_regression_forward.1} parent=0 // pred_region
    _
  $region5: #{logistic_regression_forward.1} parent=0 // pred_fallthru
    _
  // Predicated region
  $region6: #{logistic_regression_forward.1} parent=0 // pred_check
    _
  $region7: #{logistic_regression_forward.1} parent=0 // pred_check_branch
    %17 = sbr.rel (0) target = $region9
  $region8: #{logistic_regression_forward.1} parent=0 // pred_region
    _
  $region9: #{logistic_regression_forward.1} parent=0 // pred_fallthru
    _
  // Predicated region
  $region10: #{logistic_regression_forward.1} parent=0 // pred_check
    _
  $region11: #{logistic_regression_forward.1} parent=0 // pred_check_branch
    %19 = sbr.rel (0) target = $region13
  $region12: #{logistic_regression_forward.1} parent=0 // pred_region
    _
  $region13: #{logistic_regression_forward.1} parent=0 // pred_fallthru
    _
  // Predicated region
  $region14: #{logistic_regression_forward.1} parent=0 // pred_check
    _
  $region15: #{logistic_regression_forward.1} parent=0 // pred_check_branch
    %21 = sbr.rel (0) target = $region17
  $region16: #{logistic_regression_forward.1} parent=0 // pred_region
    _
  $region17: #{logistic_regression_forward.1} parent=0 // pred_fallthru
    _
  // Predicated region
  $region18: #{logistic_regression_forward.1} parent=0 // pred_check
    _
  $region19: #{logistic_regression_forward.1} parent=0 // pred_check_branch
    %23 = sbr.rel (0) target = $region21
  $region20: #{logistic_regression_forward.1} parent=0 // pred_region
    _
  $region21: #{logistic_regression_forward.1} parent=0 // pred_fallthru
    _
  // Predicated region
  $region22: #{logistic_regression_forward.1} parent=0 // pred_check
    _
  $region23: #{logistic_regression_forward.1} parent=0 // pred_check_branch
    %25 = sbr.rel (0) target = $region25
  $region24: #{logistic_regression_forward.1} parent=0 // pred_region
    _
  $region25: #{logistic_regression_forward.1} parent=0 // pred_fallthru
    _
  // Predicated region
  $region26: #{logistic_regression_forward.1} parent=0 // pred_check
    _
  $region27: #{logistic_regression_forward.1} parent=0 // pred_check_branch
    %27 = sbr.rel (0) target = $region29
  $region28: #{logistic_regression_forward.1} parent=0 // pred_region
    _
  $region29: #{logistic_regression_forward.1} parent=0 // pred_fallthru
    _
  // Predicated region
  $region30: #{logistic_regression_forward.1} parent=0 // pred_check
    _
  $region31: #{logistic_regression_forward.1} parent=0 // pred_check_branch
    %29 = sbr.rel (0) target = $region33
  $region32: #{logistic_regression_forward.1} parent=0 // pred_region
    _
  $region33: #{logistic_regression_forward.1} parent=0 // pred_fallthru
    _
  // Predicated region
  $region34: #{logistic_regression_forward.1} parent=0 // pred_check
    _
  $region35: #{logistic_regression_forward.1} parent=0 // pred_check_branch
    %31 = sbr.rel (0) target = $region37
  $region36: #{logistic_regression_forward.1} parent=0 // pred_region
    _
  $region37: #{logistic_regression_forward.1} parent=0 // pred_fallthru
    _
  %v32 = vld [vmem:[%s0] sm:$0xff]
  %v33 = vld [vmem:[%s0 + $0x8] sm:$0xff]
  %v34 = vld [vmem:[%s0 + $0x10] sm:$0xff]
  %v35 = vld [vmem:[%s0 + $0x18] sm:$0xff]
  %v36 = vld [vmem:[%s0 + $0x20] sm:$0xff]
  %v37 = vld [vmem:[%s0 + $0x28] sm:$0xff]
  %v38 = vld [vmem:[%s0 + $0x30] sm:$0xff]
  %v39 = vld [vmem:[%s0 + $0x38] sm:$0xff]
  %v40 = vld [vmem:[%s0 + $0x40] sm:$0xff]
  %v41 = vld [vmem:[%s0 + $0x48] sm:$0xff]
  %v42 = vld [vmem:[%s0 + $0x50] sm:$0xff]
  %v43 = vld [vmem:[%s0 + $0x58] sm:$0xff]
  %v44 = vld [vmem:[%s0 + $0x60] sm:$0xff]
  %v45 = vld [vmem:[%s0 + $0x68] sm:$0xff]
  %v46 = vld [vmem:[%s0 + $0x70] sm:$0xff]
  %v47 = vld [vmem:[%s0 + $0x78] sm:$0xff]
  %v48 = vld [vmem:[%s0 + $0x80] sm:$0xff]
  %v49 = vld [vmem:[%s0 + $0x88] sm:$0xff]
  %v50 = vld [vmem:[%s0 + $0x90] sm:$0xff]
  %v51 = vld [vmem:[%s0 + $0x98] sm:$0xff]
  %v52 = vld [vmem:[%s0 + $0xa0] sm:$0xff]
  %v53 = vld [vmem:[%s0 + $0xa8] sm:$0xff]
  %v54 = vld [vmem:[%s0 + $0xb0] sm:$0xff]
  %v55 = vld [vmem:[%s0 + $0xb8] sm:$0xff]
  %v56 = vld [vmem:[%s0 + $0xc0] sm:$0xff]
  %v57 = vld [vmem:[%s0 + $0xc8] sm:$0xff]
  %v58 = vld [vmem:[%s0 + $0xd0] sm:$0xff]
  %v59 = vld [vmem:[%s0 + $0xd8] sm:$0xff]
  %v60 = vld [vmem:[%s0 + $0xe0] sm:$0xff]
  %v61 = vld [vmem:[%s0 + $0xe8] sm:$0xff]
  %v62 = vld [vmem:[%s0 + $0xf0] sm:$0xff]
  %v63 = vld [vmem:[%s0 + $0xf8] sm:$0xff]
  %v64 = vld [vmem:[%s0 + $0x100] sm:$0xff]
  %v65 = vld [vmem:[%s0 + $0x108] sm:$0xff]
  %v66 = vld [vmem:[%s0 + $0x110] sm:$0xff]
  %v67 = vld [vmem:[%s0 + $0x118] sm:$0xff]
  %v68 = vld [vmem:[%s0 + $0x120] sm:$0xff]
  %v69 = vld [vmem:[%s0 + $0x128] sm:$0xff]
  %v70 = vld [vmem:[%s1] sm:$0xff]
  %v71 = vld [vmem:[%s1 + $0x8] sm:$0xff]
  %v72 = vld [vmem:[%s1 + $0x10] sm:$0xff]
  %v73 = vld [vmem:[%s1 + $0x18] sm:$0xff]
  %v74 = vld [vmem:[%s1 + $0x20] sm:$0xff]
  %v75 = vld [vmem:[%s1 + $0x28] sm:$0xff]
  %v76 = vld [vmem:[%s1 + $0x30] sm:$0xff]
  %v77 = vld [vmem:[%s1 + $0x38] sm:$0xff]
  %v78 = vld [vmem:[%s1 + $0x40] sm:$0xff]
  %v79 = vld [vmem:[%s1 + $0x48] sm:$0xff]
  %v80 = vld [vmem:[%s1 + $0x50] sm:$0xff]
  %v81 = vld [vmem:[%s1 + $0x58] sm:$0xff]
  %v82 = vld [vmem:[%s1 + $0x60] sm:$0xff]
  %v83 = vld [vmem:[%s1 + $0x68] sm:$0xff]
  %v84 = vld [vmem:[%s1 + $0x70] sm:$0xff]
  %v85 = vld [vmem:[%s1 + $0x78] sm:$0xff]
  %v86 = vld [vmem:[%s2] sm:$0x1]
  %v88 = vlaneseq
  %v89 = vshrl.u32 %v88, 7
  %v90 = vsub.s32 0, %v89
  %v91 = vrot.slane %v86, %v90
  %93 = vmatprep.subr.mxu0 0.0
  %94 = vmatpush1.msra.mxu0 %v85
  %95 = vmatprep.subr.mxu0 0.0
  %96 = vmatpush1.msra.mxu0 %v84
  %97 = vmatprep.subr.mxu0 0.0
  %98 = vmatpush1.msra.mxu0 %v83
  %99 = vmatprep.subr.mxu0 0.0
  %100 = vmatpush1.msra.mxu0 %v82
  %101 = vmatprep.subr.mxu0 0.0
  %102 = vmatpush1.msra.mxu0 %v81
  %103 = vmatprep.subr.mxu0 0.0
  %104 = vmatpush1.msra.mxu0 %v80
  %105 = vmatprep.subr.mxu0 0.0
  %106 = vmatpush1.msra.mxu0 %v79
  %107 = vmatprep.subr.mxu0 0.0
  %108 = vmatpush1.msra.mxu0 %v78
  %109 = vmatprep.subr.mxu0 0.0
  %110 = vmatpush1.msra.mxu0 %v77
  %111 = vmatprep.subr.mxu0 0.0
  %112 = vmatpush1.msra.mxu0 %v76
  %113 = vmatprep.subr.mxu0 0.0
  %114 = vmatpush1.msra.mxu0 %v75
  %115 = vmatprep.subr.mxu0 0.0
  %116 = vmatpush1.msra.mxu0 %v74
  %117 = vmatprep.subr.mxu0 0.0
  %118 = vmatpush1.msra.mxu0 %v73
  %119 = vmatprep.subr.mxu0 0.0
  %120 = vmatpush1.msra.mxu0 %v72
  %121 = vmatprep.subr.mxu0 0.0
  %122 = vmatpush1.msra.mxu0 %v71
  %123 = vmatprep.subr.mxu0 0.0
  %124 = vmatpush1.msra.mxu0 %v70
  %125 = vmatprep.subr.mxu0 0.0
  %126 = vmatpush2.msra.mxu0 0.0
  %127 = vmatprep.subr.mxu0 0.0
  %128 = vmatpush2.msra.mxu0 0.0
  %129 = vmatprep.subr.mxu0 0.0
  %130 = vmatpush2.msra.mxu0 0.0
  %131 = vmatprep.subr.mxu0 0.0
  %132 = vmatpush2.msra.mxu0 0.0
  %133 = vmatprep.subr.mxu0 0.0
  %134 = vmatpush2.msra.mxu0 0.0
  %135 = vmatprep.subr.mxu0 0.0
  %136 = vmatpush2.msra.mxu0 0.0
  %137 = vmatprep.subr.mxu0 0.0
  %138 = vmatpush2.msra.mxu0 0.0
  %139 = vmatprep.subr.mxu0 0.0
  %140 = vmatpush2.msra.mxu0 0.0
  %141 = vmatprep.subr.mxu0 0.0
  %142 = vmatpush2.msra.mxu0 0.0
  %143 = vmatprep.subr.mxu0 0.0
  %144 = vmatpush2.msra.mxu0 0.0
  %145 = vmatprep.subr.mxu0 0.0
  %146 = vmatpush2.msra.mxu0 0.0
  %147 = vmatprep.subr.mxu0 0.0
  %148 = vmatpush2.msra.mxu0 0.0
  %149 = vmatprep.subr.mxu0 0.0
  %150 = vmatpush2.msra.mxu0 0.0
  %151 = vmatprep.subr.mxu0 0.0
  %152 = vmatpush2.msra.mxu0 0.0
  %153 = vmatprep.subr.mxu0 0.0
  %154 = vmatpush2.msra.mxu0 0.0
  %155 = vmatprep.subr.mxu0 0.0
  %156 = vmatpush2.msra.mxu0 0.0
  %157 = vmatprep.mubr.f32.mxu0 0.0
  %158 = vmatmul.mubr.f32.gmra.mxu0 %v32
  %v159 = vpop.f32.mrf.mxu0
  %v160 = vadd.f32 %v91, %v159
  %v161 = vpop.f32.mrf.mxu0
  %162 = vmatprep.mubr.f32.mxu0 0.0
  %163 = vmatmul.mubr.f32.gmra.mxu0 %v33
  %v164 = vpop.f32.mrf.mxu0
  %v165 = vadd.f32 %v91, %v164
  %v166 = vpop.f32.mrf.mxu0
  %167 = vmatprep.mubr.f32.mxu0 0.0
  %168 = vmatmul.mubr.f32.gmra.mxu0 %v34
  %v169 = vpop.f32.mrf.mxu0
  %v170 = vadd.f32 %v91, %v169
  %v171 = vpop.f32.mrf.mxu0
  %172 = vmatprep.mubr.f32.mxu0 0.0
  %173 = vmatmul.mubr.f32.gmra.mxu0 %v35
  %v174 = vpop.f32.mrf.mxu0
  %v175 = vadd.f32 %v91, %v174
  %v176 = vpop.f32.mrf.mxu0
  %177 = vmatprep.mubr.f32.mxu0 0.0
  %178 = vmatmul.mubr.f32.gmra.mxu0 %v36
  %v179 = vpop.f32.mrf.mxu0
  %v180 = vadd.f32 %v91, %v179
  %v181 = vpop.f32.mrf.mxu0
  %182 = vmatprep.mubr.f32.mxu0 0.0
  %183 = vmatmul.mubr.f32.gmra.mxu0 %v37
  %v184 = vpop.f32.mrf.mxu0
  %v185 = vadd.f32 %v91, %v184
  %v186 = vpop.f32.mrf.mxu0
  %187 = vmatprep.mubr.f32.mxu0 0.0
  %188 = vmatmul.mubr.f32.gmra.mxu0 %v38
  %v189 = vpop.f32.mrf.mxu0
  %v190 = vadd.f32 %v91, %v189
  %v191 = vpop.f32.mrf.mxu0
  %192 = vmatprep.mubr.f32.mxu0 0.0
  %193 = vmatmul.mubr.f32.gmra.mxu0 %v39
  %v194 = vpop.f32.mrf.mxu0
  %v195 = vadd.f32 %v91, %v194
  %v196 = vpop.f32.mrf.mxu0
  %197 = vmatprep.mubr.f32.mxu0 0.0
  %198 = vmatmul.mubr.f32.gmra.mxu0 %v40
  %v199 = vpop.f32.mrf.mxu0
  %v200 = vadd.f32 %v91, %v199
  %v201 = vpop.f32.mrf.mxu0
  %202 = vmatprep.mubr.f32.mxu0 0.0
  %203 = vmatmul.mubr.f32.gmra.mxu0 %v41
  %v204 = vpop.f32.mrf.mxu0
  %v205 = vadd.f32 %v91, %v204
  %v206 = vpop.f32.mrf.mxu0
  %207 = vmatprep.mubr.f32.mxu0 0.0
  %208 = vmatmul.mubr.f32.gmra.mxu0 %v42
  %v209 = vpop.f32.mrf.mxu0
  %v210 = vadd.f32 %v91, %v209
  %v211 = vpop.f32.mrf.mxu0
  %212 = vmatprep.mubr.f32.mxu0 0.0
  %213 = vmatmul.mubr.f32.gmra.mxu0 %v43
  %v214 = vpop.f32.mrf.mxu0
  %v215 = vadd.f32 %v91, %v214
  %v216 = vpop.f32.mrf.mxu0
  %217 = vmatprep.mubr.f32.mxu0 0.0
  %218 = vmatmul.mubr.f32.gmra.mxu0 %v44
  %v219 = vpop.f32.mrf.mxu0
  %v220 = vadd.f32 %v91, %v219
  %v221 = vpop.f32.mrf.mxu0
  %222 = vmatprep.mubr.f32.mxu0 0.0
  %223 = vmatmul.mubr.f32.gmra.mxu0 %v45
  %v224 = vpop.f32.mrf.mxu0
  %v225 = vadd.f32 %v91, %v224
  %v226 = vpop.f32.mrf.mxu0
  %227 = vmatprep.mubr.f32.mxu0 0.0
  %228 = vmatmul.mubr.f32.gmra.mxu0 %v46
  %v229 = vpop.f32.mrf.mxu0
  %v230 = vadd.f32 %v91, %v229
  %v231 = vpop.f32.mrf.mxu0
  %232 = vmatprep.mubr.f32.mxu0 0.0
  %233 = vmatmul.mubr.f32.gmra.mxu0 %v47
  %v234 = vpop.f32.mrf.mxu0
  %v235 = vadd.f32 %v91, %v234
  %v236 = vpop.f32.mrf.mxu0
  %237 = vmatprep.mubr.f32.mxu0 0.0
  %238 = vmatmul.mubr.f32.gmra.mxu0 %v48
  %v239 = vpop.f32.mrf.mxu0
  %v240 = vadd.f32 %v91, %v239
  %v241 = vpop.f32.mrf.mxu0
  %242 = vmatprep.mubr.f32.mxu0 0.0
  %243 = vmatmul.mubr.f32.gmra.mxu0 %v49
  %v244 = vpop.f32.mrf.mxu0
  %v245 = vadd.f32 %v91, %v244
  %v246 = vpop.f32.mrf.mxu0
  %247 = vmatprep.mubr.f32.mxu0 0.0
  %248 = vmatmul.mubr.f32.gmra.mxu0 %v50
  %v249 = vpop.f32.mrf.mxu0
  %v250 = vadd.f32 %v91, %v249
  %v251 = vpop.f32.mrf.mxu0
  %252 = vmatprep.mubr.f32.mxu0 0.0
  %253 = vmatmul.mubr.f32.gmra.mxu0 %v51
  %v254 = vpop.f32.mrf.mxu0
  %v255 = vadd.f32 %v91, %v254
  %v256 = vpop.f32.mrf.mxu0
  %257 = vmatprep.mubr.f32.mxu0 0.0
  %258 = vmatmul.mubr.f32.gmra.mxu0 %v52
  %v259 = vpop.f32.mrf.mxu0
  %v260 = vadd.f32 %v91, %v259
  %v261 = vpop.f32.mrf.mxu0
  %262 = vmatprep.mubr.f32.mxu0 0.0
  %263 = vmatmul.mubr.f32.gmra.mxu0 %v53
  %v264 = vpop.f32.mrf.mxu0
  %v265 = vadd.f32 %v91, %v264
  %v266 = vpop.f32.mrf.mxu0
  %267 = vmatprep.mubr.f32.mxu0 0.0
  %268 = vmatmul.mubr.f32.gmra.mxu0 %v54
  %v269 = vpop.f32.mrf.mxu0
  %v270 = vadd.f32 %v91, %v269
  %v271 = vpop.f32.mrf.mxu0
  %272 = vmatprep.mubr.f32.mxu0 0.0
  %273 = vmatmul.mubr.f32.gmra.mxu0 %v55
  %v274 = vpop.f32.mrf.mxu0
  %v275 = vadd.f32 %v91, %v274
  %v276 = vpop.f32.mrf.mxu0
  %277 = vmatprep.mubr.f32.mxu0 0.0
  %278 = vmatmul.mubr.f32.gmra.mxu0 %v56
  %v279 = vpop.f32.mrf.mxu0
  %v280 = vadd.f32 %v91, %v279
  %v281 = vpop.f32.mrf.mxu0
  %282 = vmatprep.mubr.f32.mxu0 0.0
  %283 = vmatmul.mubr.f32.gmra.mxu0 %v57
  %v284 = vpop.f32.mrf.mxu0
  %v285 = vadd.f32 %v91, %v284
  %v286 = vpop.f32.mrf.mxu0
  %287 = vmatprep.mubr.f32.mxu0 0.0
  %288 = vmatmul.mubr.f32.gmra.mxu0 %v58
  %v289 = vpop.f32.mrf.mxu0
  %v290 = vadd.f32 %v91, %v289
  %v291 = vpop.f32.mrf.mxu0
  %292 = vmatprep.mubr.f32.mxu0 0.0
  %293 = vmatmul.mubr.f32.gmra.mxu0 %v59
  %v294 = vpop.f32.mrf.mxu0
  %v295 = vadd.f32 %v91, %v294
  %v296 = vpop.f32.mrf.mxu0
  %297 = vmatprep.mubr.f32.mxu0 0.0
  %298 = vmatmul.mubr.f32.gmra.mxu0 %v60
  %v299 = vpop.f32.mrf.mxu0
  %v300 = vadd.f32 %v91, %v299
  %v301 = vpop.f32.mrf.mxu0
  %302 = vmatprep.mubr.f32.mxu0 0.0
  %303 = vmatmul.mubr.f32.gmra.mxu0 %v61
  %v304 = vpop.f32.mrf.mxu0
  %v305 = vadd.f32 %v91, %v304
  %v306 = vpop.f32.mrf.mxu0
  %307 = vmatprep.mubr.f32.mxu0 0.0
  %308 = vmatmul.mubr.f32.gmra.mxu0 %v62
  %v309 = vpop.f32.mrf.mxu0
  %v310 = vadd.f32 %v91, %v309
  %v311 = vpop.f32.mrf.mxu0
  %312 = vmatprep.mubr.f32.mxu0 0.0
  %313 = vmatmul.mubr.f32.gmra.mxu0 %v63
  %v314 = vpop.f32.mrf.mxu0
  %v315 = vadd.f32 %v91, %v314
  %v316 = vpop.f32.mrf.mxu0
  %317 = vmatprep.mubr.f32.mxu0 0.0
  %318 = vmatmul.mubr.f32.gmra.mxu0 %v64
  %v319 = vpop.f32.mrf.mxu0
  %v320 = vadd.f32 %v91, %v319
  %v321 = vpop.f32.mrf.mxu0
  %322 = vmatprep.mubr.f32.mxu0 0.0
  %323 = vmatmul.mubr.f32.gmra.mxu0 %v65
  %v324 = vpop.f32.mrf.mxu0
  %v325 = vadd.f32 %v91, %v324
  %v326 = vpop.f32.mrf.mxu0
  %327 = vmatprep.mubr.f32.mxu0 0.0
  %328 = vmatmul.mubr.f32.gmra.mxu0 %v66
  %v329 = vpop.f32.mrf.mxu0
  %v330 = vadd.f32 %v91, %v329
  %v331 = vpop.f32.mrf.mxu0
  %332 = vmatprep.mubr.f32.mxu0 0.0
  %333 = vmatmul.mubr.f32.gmra.mxu0 %v67
  %v334 = vpop.f32.mrf.mxu0
  %v335 = vadd.f32 %v91, %v334
  %v336 = vpop.f32.mrf.mxu0
  %337 = vmatprep.mubr.f32.mxu0 0.0
  %338 = vmatmul.mubr.f32.gmra.mxu0 %v68
  %v339 = vpop.f32.mrf.mxu0
  %v340 = vadd.f32 %v91, %v339
  %v341 = vpop.f32.mrf.mxu0
  %342 = vmatprep.mubr.f32.mxu0 0.0
  %343 = vmatmul.mubr.f32.gmra.mxu0 %v69
  %v344 = vpop.f32.mrf.mxu0
  %v345 = vadd.f32 %v91, %v344
  %v346 = vpop.f32.mrf.mxu0
  %347 = vdwg.mxu0
  %v348 = vmax.f32 %v160, 0.0
  %v349 = vmax.f32 %v165, 0.0
  %v350 = vmax.f32 %v170, 0.0
  %v351 = vmax.f32 %v175, 0.0
  %v352 = vmax.f32 %v180, 0.0
  %v353 = vmax.f32 %v185, 0.0
  %v354 = vmax.f32 %v190, 0.0
  %v355 = vmax.f32 %v195, 0.0
  %v356 = vmax.f32 %v200, 0.0
  %v357 = vmax.f32 %v205, 0.0
  %v358 = vmax.f32 %v210, 0.0
  %v359 = vmax.f32 %v215, 0.0
  %v360 = vmax.f32 %v220, 0.0
  %v361 = vmax.f32 %v225, 0.0
  %v362 = vmax.f32 %v230, 0.0
  %v363 = vmax.f32 %v235, 0.0
  %v364 = vmax.f32 %v240, 0.0
  %v365 = vmax.f32 %v245, 0.0
  %v366 = vmax.f32 %v250, 0.0
  %v367 = vmax.f32 %v255, 0.0
  %v368 = vmax.f32 %v260, 0.0
  %v369 = vmax.f32 %v265, 0.0
  %v370 = vmax.f32 %v270, 0.0
  %v371 = vmax.f32 %v275, 0.0
  %v372 = vmax.f32 %v280, 0.0
  %v373 = vmax.f32 %v285, 0.0
  %v374 = vmax.f32 %v290, 0.0
  %v375 = vmax.f32 %v295, 0.0
  %v376 = vmax.f32 %v300, 0.0
  %v377 = vmax.f32 %v305, 0.0
  %v378 = vmax.f32 %v310, 0.0
  %v379 = vmax.f32 %v315, 0.0
  %v380 = vmax.f32 %v320, 0.0
  %v381 = vmax.f32 %v325, 0.0
  %v382 = vmax.f32 %v330, 0.0
  %v383 = vmax.f32 %v335, 0.0
  %v384 = vmax.f32 %v340, 0.0
  %v385 = vmax.f32 %v345, 0.0
  %v386 = vld [vmem:[%s3] sm:$0xff]
  %v387 = vld [vmem:[%s3 + $0x8] sm:$0xff]
  %v388 = vld [vmem:[%s3 + $0x10] sm:$0xff]
  %v389 = vld [vmem:[%s3 + $0x18] sm:$0xff]
  %v390 = vld [vmem:[%s3 + $0x20] sm:$0xff]
  %v391 = vld [vmem:[%s3 + $0x28] sm:$0xff]
  %v392 = vld [vmem:[%s3 + $0x30] sm:$0xff]
  %v393 = vld [vmem:[%s3 + $0x38] sm:$0xff]
  %v394 = vld [vmem:[%s3 + $0x40] sm:$0xff]
  %v395 = vld [vmem:[%s3 + $0x48] sm:$0xff]
  %v396 = vld [vmem:[%s3 + $0x50] sm:$0xff]
  %v397 = vld [vmem:[%s3 + $0x58] sm:$0xff]
  %v398 = vld [vmem:[%s3 + $0x60] sm:$0xff]
  %v399 = vld [vmem:[%s3 + $0x68] sm:$0xff]
  %v400 = vld [vmem:[%s3 + $0x70] sm:$0xff]
  %v401 = vld [vmem:[%s3 + $0x78] sm:$0xff]
  %v402 = vld [vmem:[%s4] sm:$0x1]
  %v404 = vlaneseq
  %v405 = vshrl.u32 %v404, 7
  %v406 = vsub.s32 0, %v405
  %v407 = vrot.slane %v402, %v406
  %409 = vmatprep.subr.mxu0 0.0
  %410 = vmatpush1.msra.mxu0 %v401
  %411 = vmatprep.subr.mxu0 0.0
  %412 = vmatpush1.msra.mxu0 %v400
  %413 = vmatprep.subr.mxu0 0.0
  %414 = vmatpush1.msra.mxu0 %v399
  %415 = vmatprep.subr.mxu0 0.0
  %416 = vmatpush1.msra.mxu0 %v398
  %417 = vmatprep.subr.mxu0 0.0
  %418 = vmatpush1.msra.mxu0 %v397
  %419 = vmatprep.subr.mxu0 0.0
  %420 = vmatpush1.msra.mxu0 %v396
  %421 = vmatprep.subr.mxu0 0.0
  %422 = vmatpush1.msra.mxu0 %v395
  %423 = vmatprep.subr.mxu0 0.0
  %424 = vmatpush1.msra.mxu0 %v394
  %425 = vmatprep.subr.mxu0 0.0
  %426 = vmatpush1.msra.mxu0 %v393
  %427 = vmatprep.subr.mxu0 0.0
  %428 = vmatpush1.msra.mxu0 %v392
  %429 = vmatprep.subr.mxu0 0.0
  %430 = vmatpush1.msra.mxu0 %v391
  %431 = vmatprep.subr.mxu0 0.0
  %432 = vmatpush1.msra.mxu0 %v390
  %433 = vmatprep.subr.mxu0 0.0
  %434 = vmatpush1.msra.mxu0 %v389
  %435 = vmatprep.subr.mxu0 0.0
  %436 = vmatpush1.msra.mxu0 %v388
  %437 = vmatprep.subr.mxu0 0.0
  %438 = vmatpush1.msra.mxu0 %v387
  %439 = vmatprep.subr.mxu0 0.0
  %440 = vmatpush1.msra.mxu0 %v386
  %441 = vmatprep.subr.mxu0 0.0
  %442 = vmatpush2.msra.mxu0 0.0
  %443 = vmatprep.subr.mxu0 0.0
  %444 = vmatpush2.msra.mxu0 0.0
  %445 = vmatprep.subr.mxu0 0.0
  %446 = vmatpush2.msra.mxu0 0.0
  %447 = vmatprep.subr.mxu0 0.0
  %448 = vmatpush2.msra.mxu0 0.0
  %449 = vmatprep.subr.mxu0 0.0
  %450 = vmatpush2.msra.mxu0 0.0
  %451 = vmatprep.subr.mxu0 0.0
  %452 = vmatpush2.msra.mxu0 0.0
  %453 = vmatprep.subr.mxu0 0.0
  %454 = vmatpush2.msra.mxu0 0.0
  %455 = vmatprep.subr.mxu0 0.0
  %456 = vmatpush2.msra.mxu0 0.0
  %457 = vmatprep.subr.mxu0 0.0
  %458 = vmatpush2.msra.mxu0 0.0
  %459 = vmatprep.subr.mxu0 0.0
  %460 = vmatpush2.msra.mxu0 0.0
  %461 = vmatprep.subr.mxu0 0.0
  %462 = vmatpush2.msra.mxu0 0.0
  %463 = vmatprep.subr.mxu0 0.0
  %464 = vmatpush2.msra.mxu0 0.0
  %465 = vmatprep.subr.mxu0 0.0
  %466 = vmatpush2.msra.mxu0 0.0
  %467 = vmatprep.subr.mxu0 0.0
  %468 = vmatpush2.msra.mxu0 0.0
  %469 = vmatprep.subr.mxu0 0.0
  %470 = vmatpush2.msra.mxu0 0.0
  %471 = vmatprep.subr.mxu0 0.0
  %472 = vmatpush2.msra.mxu0 0.0
  %473 = vmatprep.mubr.f32.mxu0 0.0
  %474 = vmatmul.mubr.f32.gmra.mxu0 %v348
  %v475 = vpop.f32.mrf.mxu0
  %v476 = vadd.f32 %v407, %v475
  %v477 = vpop.f32.mrf.mxu0
  %478 = vmatprep.mubr.f32.mxu0 0.0
  %479 = vmatmul.mubr.f32.gmra.mxu0 %v349
  %v480 = vpop.f32.mrf.mxu0
  %v481 = vadd.f32 %v407, %v480
  %v482 = vpop.f32.mrf.mxu0
  %483 = vmatprep.mubr.f32.mxu0 0.0
  %484 = vmatmul.mubr.f32.gmra.mxu0 %v350
  %v485 = vpop.f32.mrf.mxu0
  %v486 = vadd.f32 %v407, %v485
  %v487 = vpop.f32.mrf.mxu0
  %488 = vmatprep.mubr.f32.mxu0 0.0
  %489 = vmatmul.mubr.f32.gmra.mxu0 %v351
  %v490 = vpop.f32.mrf.mxu0
  %v491 = vadd.f32 %v407, %v490
  %v492 = vpop.f32.mrf.mxu0
  %493 = vmatprep.mubr.f32.mxu0 0.0
  %494 = vmatmul.mubr.f32.gmra.mxu0 %v352
  %v495 = vpop.f32.mrf.mxu0
  %v496 = vadd.f32 %v407, %v495
  %v497 = vpop.f32.mrf.mxu0
  %498 = vmatprep.mubr.f32.mxu0 0.0
  %499 = vmatmul.mubr.f32.gmra.mxu0 %v353
  %v500 = vpop.f32.mrf.mxu0
  %v501 = vadd.f32 %v407, %v500
  %v502 = vpop.f32.mrf.mxu0
  %503 = vmatprep.mubr.f32.mxu0 0.0
  %504 = vmatmul.mubr.f32.gmra.mxu0 %v354
  %v505 = vpop.f32.mrf.mxu0
  %v506 = vadd.f32 %v407, %v505
  %v507 = vpop.f32.mrf.mxu0
  %508 = vmatprep.mubr.f32.mxu0 0.0
  %509 = vmatmul.mubr.f32.gmra.mxu0 %v355
  %v510 = vpop.f32.mrf.mxu0
  %v511 = vadd.f32 %v407, %v510
  %v512 = vpop.f32.mrf.mxu0
  %513 = vmatprep.mubr.f32.mxu0 0.0
  %514 = vmatmul.mubr.f32.gmra.mxu0 %v356
  %v515 = vpop.f32.mrf.mxu0
  %v516 = vadd.f32 %v407, %v515
  %v517 = vpop.f32.mrf.mxu0
  %518 = vmatprep.mubr.f32.mxu0 0.0
  %519 = vmatmul.mubr.f32.gmra.mxu0 %v357
  %v520 = vpop.f32.mrf.mxu0
  %v521 = vadd.f32 %v407, %v520
  %v522 = vpop.f32.mrf.mxu0
  %523 = vmatprep.mubr.f32.mxu0 0.0
  %524 = vmatmul.mubr.f32.gmra.mxu0 %v358
  %v525 = vpop.f32.mrf.mxu0
  %v526 = vadd.f32 %v407, %v525
  %v527 = vpop.f32.mrf.mxu0
  %528 = vmatprep.mubr.f32.mxu0 0.0
  %529 = vmatmul.mubr.f32.gmra.mxu0 %v359
  %v530 = vpop.f32.mrf.mxu0
  %v531 = vadd.f32 %v407, %v530
  %v532 = vpop.f32.mrf.mxu0
  %533 = vmatprep.mubr.f32.mxu0 0.0
  %534 = vmatmul.mubr.f32.gmra.mxu0 %v360
  %v535 = vpop.f32.mrf.mxu0
  %v536 = vadd.f32 %v407, %v535
  %v537 = vpop.f32.mrf.mxu0
  %538 = vmatprep.mubr.f32.mxu0 0.0
  %539 = vmatmul.mubr.f32.gmra.mxu0 %v361
  %v540 = vpop.f32.mrf.mxu0
  %v541 = vadd.f32 %v407, %v540
  %v542 = vpop.f32.mrf.mxu0
  %543 = vmatprep.mubr.f32.mxu0 0.0
  %544 = vmatmul.mubr.f32.gmra.mxu0 %v362
  %v545 = vpop.f32.mrf.mxu0
  %v546 = vadd.f32 %v407, %v545
  %v547 = vpop.f32.mrf.mxu0
  %548 = vmatprep.mubr.f32.mxu0 0.0
  %549 = vmatmul.mubr.f32.gmra.mxu0 %v363
  %v550 = vpop.f32.mrf.mxu0
  %v551 = vadd.f32 %v407, %v550
  %v552 = vpop.f32.mrf.mxu0
  %553 = vmatprep.mubr.f32.mxu0 0.0
  %554 = vmatmul.mubr.f32.gmra.mxu0 %v364
  %v555 = vpop.f32.mrf.mxu0
  %v556 = vadd.f32 %v407, %v555
  %v557 = vpop.f32.mrf.mxu0
  %558 = vmatprep.mubr.f32.mxu0 0.0
  %559 = vmatmul.mubr.f32.gmra.mxu0 %v365
  %v560 = vpop.f32.mrf.mxu0
  %v561 = vadd.f32 %v407, %v560
  %v562 = vpop.f32.mrf.mxu0
  %563 = vmatprep.mubr.f32.mxu0 0.0
  %564 = vmatmul.mubr.f32.gmra.mxu0 %v366
  %v565 = vpop.f32.mrf.mxu0
  %v566 = vadd.f32 %v407, %v565
  %v567 = vpop.f32.mrf.mxu0
  %568 = vmatprep.mubr.f32.mxu0 0.0
  %569 = vmatmul.mubr.f32.gmra.mxu0 %v367
  %v570 = vpop.f32.mrf.mxu0
  %v571 = vadd.f32 %v407, %v570
  %v572 = vpop.f32.mrf.mxu0
  %573 = vmatprep.mubr.f32.mxu0 0.0
  %574 = vmatmul.mubr.f32.gmra.mxu0 %v368
  %v575 = vpop.f32.mrf.mxu0
  %v576 = vadd.f32 %v407, %v575
  %v577 = vpop.f32.mrf.mxu0
  %578 = vmatprep.mubr.f32.mxu0 0.0
  %579 = vmatmul.mubr.f32.gmra.mxu0 %v369
  %v580 = vpop.f32.mrf.mxu0
  %v581 = vadd.f32 %v407, %v580
  %v582 = vpop.f32.mrf.mxu0
  %583 = vmatprep.mubr.f32.mxu0 0.0
  %584 = vmatmul.mubr.f32.gmra.mxu0 %v370
  %v585 = vpop.f32.mrf.mxu0
  %v586 = vadd.f32 %v407, %v585
  %v587 = vpop.f32.mrf.mxu0
  %588 = vmatprep.mubr.f32.mxu0 0.0
  %589 = vmatmul.mubr.f32.gmra.mxu0 %v371
  %v590 = vpop.f32.mrf.mxu0
  %v591 = vadd.f32 %v407, %v590
  %v592 = vpop.f32.mrf.mxu0
  %593 = vmatprep.mubr.f32.mxu0 0.0
  %594 = vmatmul.mubr.f32.gmra.mxu0 %v372
  %v595 = vpop.f32.mrf.mxu0
  %v596 = vadd.f32 %v407, %v595
  %v597 = vpop.f32.mrf.mxu0
  %598 = vmatprep.mubr.f32.mxu0 0.0
  %599 = vmatmul.mubr.f32.gmra.mxu0 %v373
  %v600 = vpop.f32.mrf.mxu0
  %v601 = vadd.f32 %v407, %v600
  %v602 = vpop.f32.mrf.mxu0
  %603 = vmatprep.mubr.f32.mxu0 0.0
  %604 = vmatmul.mubr.f32.gmra.mxu0 %v374
  %v605 = vpop.f32.mrf.mxu0
  %v606 = vadd.f32 %v407, %v605
  %v607 = vpop.f32.mrf.mxu0
  %608 = vmatprep.mubr.f32.mxu0 0.0
  %609 = vmatmul.mubr.f32.gmra.mxu0 %v375
  %v610 = vpop.f32.mrf.mxu0
  %v611 = vadd.f32 %v407, %v610
  %v612 = vpop.f32.mrf.mxu0
  %613 = vmatprep.mubr.f32.mxu0 0.0
  %614 = vmatmul.mubr.f32.gmra.mxu0 %v376
  %v615 = vpop.f32.mrf.mxu0
  %v616 = vadd.f32 %v407, %v615
  %v617 = vpop.f32.mrf.mxu0
  %618 = vmatprep.mubr.f32.mxu0 0.0
  %619 = vmatmul.mubr.f32.gmra.mxu0 %v377
  %v620 = vpop.f32.mrf.mxu0
  %v621 = vadd.f32 %v407, %v620
  %v622 = vpop.f32.mrf.mxu0
  %623 = vmatprep.mubr.f32.mxu0 0.0
  %624 = vmatmul.mubr.f32.gmra.mxu0 %v378
  %v625 = vpop.f32.mrf.mxu0
  %v626 = vadd.f32 %v407, %v625
  %v627 = vpop.f32.mrf.mxu0
  %628 = vmatprep.mubr.f32.mxu0 0.0
  %629 = vmatmul.mubr.f32.gmra.mxu0 %v379
  %v630 = vpop.f32.mrf.mxu0
  %v631 = vadd.f32 %v407, %v630
  %v632 = vpop.f32.mrf.mxu0
  %633 = vmatprep.mubr.f32.mxu0 0.0
  %634 = vmatmul.mubr.f32.gmra.mxu0 %v380
  %v635 = vpop.f32.mrf.mxu0
  %v636 = vadd.f32 %v407, %v635
  %v637 = vpop.f32.mrf.mxu0
  %638 = vmatprep.mubr.f32.mxu0 0.0
  %639 = vmatmul.mubr.f32.gmra.mxu0 %v381
  %v640 = vpop.f32.mrf.mxu0
  %v641 = vadd.f32 %v407, %v640
  %v642 = vpop.f32.mrf.mxu0
  %643 = vmatprep.mubr.f32.mxu0 0.0
  %644 = vmatmul.mubr.f32.gmra.mxu0 %v382
  %v645 = vpop.f32.mrf.mxu0
  %v646 = vadd.f32 %v407, %v645
  %v647 = vpop.f32.mrf.mxu0
  %648 = vmatprep.mubr.f32.mxu0 0.0
  %649 = vmatmul.mubr.f32.gmra.mxu0 %v383
  %v650 = vpop.f32.mrf.mxu0
  %v651 = vadd.f32 %v407, %v650
  %v652 = vpop.f32.mrf.mxu0
  %653 = vmatprep.mubr.f32.mxu0 0.0
  %654 = vmatmul.mubr.f32.gmra.mxu0 %v384
  %v655 = vpop.f32.mrf.mxu0
  %v656 = vadd.f32 %v407, %v655
  %v657 = vpop.f32.mrf.mxu0
  %658 = vmatprep.mubr.f32.mxu0 0.0
  %659 = vmatmul.mubr.f32.gmra.mxu0 %v385
  %v660 = vpop.f32.mrf.mxu0
  %v661 = vadd.f32 %v407, %v660
  %v662 = vpop.f32.mrf.mxu0
  %663 = vdwg.mxu0
  %v664 = vmax.f32 %v476, 0.0
  %v665 = vmax.f32 %v481, 0.0
  %v666 = vmax.f32 %v486, 0.0
  %v667 = vmax.f32 %v491, 0.0
  %v668 = vmax.f32 %v496, 0.0
  %v669 = vmax.f32 %v501, 0.0
  %v670 = vmax.f32 %v506, 0.0
  %v671 = vmax.f32 %v511, 0.0
  %v672 = vmax.f32 %v516, 0.0
  %v673 = vmax.f32 %v521, 0.0
  %v674 = vmax.f32 %v526, 0.0
  %v675 = vmax.f32 %v531, 0.0
  %v676 = vmax.f32 %v536, 0.0
  %v677 = vmax.f32 %v541, 0.0
  %v678 = vmax.f32 %v546, 0.0
  %v679 = vmax.f32 %v551, 0.0
  %v680 = vmax.f32 %v556, 0.0
  %v681 = vmax.f32 %v561, 0.0
  %v682 = vmax.f32 %v566, 0.0
  %v683 = vmax.f32 %v571, 0.0
  %v684 = vmax.f32 %v576, 0.0
  %v685 = vmax.f32 %v581, 0.0
  %v686 = vmax.f32 %v586, 0.0
  %v687 = vmax.f32 %v591, 0.0
  %v688 = vmax.f32 %v596, 0.0
  %v689 = vmax.f32 %v601, 0.0
  %v690 = vmax.f32 %v606, 0.0
  %v691 = vmax.f32 %v611, 0.0
  %v692 = vmax.f32 %v616, 0.0
  %v693 = vmax.f32 %v621, 0.0
  %v694 = vmax.f32 %v626, 0.0
  %v695 = vmax.f32 %v631, 0.0
  %v696 = vmax.f32 %v636, 0.0
  %v697 = vmax.f32 %v641, 0.0
  %v698 = vmax.f32 %v646, 0.0
  %v699 = vmax.f32 %v651, 0.0
  %v700 = vmax.f32 %v656, 0.0
  %v701 = vmax.f32 %v661, 0.0
  %v702 = vld [vmem:[%s5] sm:$0xff]
  %v703 = vld [vmem:[%s5 + $0x8] sm:$0xff]
  %v704 = vld [vmem:[%s5 + $0x10] sm:$0xff]
  %v705 = vld [vmem:[%s5 + $0x18] sm:$0xff]
  %v706 = vld [vmem:[%s5 + $0x20] sm:$0xff]
  %v707 = vld [vmem:[%s5 + $0x28] sm:$0xff]
  %v708 = vld [vmem:[%s5 + $0x30] sm:$0xff]
  %v709 = vld [vmem:[%s5 + $0x38] sm:$0xff]
  %v710 = vld [vmem:[%s5 + $0x40] sm:$0xff]
  %v711 = vld [vmem:[%s5 + $0x48] sm:$0xff]
  %v712 = vld [vmem:[%s5 + $0x50] sm:$0xff]
  %v713 = vld [vmem:[%s5 + $0x58] sm:$0xff]
  %v714 = vld [vmem:[%s5 + $0x60] sm:$0xff]
  %v715 = vld [vmem:[%s5 + $0x68] sm:$0xff]
  %v716 = vld [vmem:[%s5 + $0x70] sm:$0xff]
  %v717 = vld [vmem:[%s5 + $0x78] sm:$0xff]
  %v718 = vld [vmem:[%s6] sm:$0x1]
  %v720 = vlaneseq
  %v721 = vshrl.u32 %v720, 7
  %v722 = vsub.s32 0, %v721
  %v723 = vrot.slane %v718, %v722
  %725 = vmatprep.subr.mxu0 0.0
  %726 = vmatpush1.msra.mxu0 %v717
  %727 = vmatprep.subr.mxu0 0.0
  %728 = vmatpush1.msra.mxu0 %v716
  %729 = vmatprep.subr.mxu0 0.0
  %730 = vmatpush1.msra.mxu0 %v715
  %731 = vmatprep.subr.mxu0 0.0
  %732 = vmatpush1.msra.mxu0 %v714
  %733 = vmatprep.subr.mxu0 0.0
  %734 = vmatpush1.msra.mxu0 %v713
  %735 = vmatprep.subr.mxu0 0.0
  %736 = vmatpush1.msra.mxu0 %v712
  %737 = vmatprep.subr.mxu0 0.0
  %738 = vmatpush1.msra.mxu0 %v711
  %739 = vmatprep.subr.mxu0 0.0
  %740 = vmatpush1.msra.mxu0 %v710
  %741 = vmatprep.subr.mxu0 0.0
  %742 = vmatpush1.msra.mxu0 %v709
  %743 = vmatprep.subr.mxu0 0.0
  %744 = vmatpush1.msra.mxu0 %v708
  %745 = vmatprep.subr.mxu0 0.0
  %746 = vmatpush1.msra.mxu0 %v707
  %747 = vmatprep.subr.mxu0 0.0
  %748 = vmatpush1.msra.mxu0 %v706
  %749 = vmatprep.subr.mxu0 0.0
  %750 = vmatpush1.msra.mxu0 %v705
  %751 = vmatprep.subr.mxu0 0.0
  %752 = vmatpush1.msra.mxu0 %v704
  %753 = vmatprep.subr.mxu0 0.0
  %754 = vmatpush1.msra.mxu0 %v703
  %755 = vmatprep.subr.mxu0 0.0
  %756 = vmatpush1.msra.mxu0 %v702
  %757 = vmatprep.subr.mxu0 0.0
  %758 = vmatpush2.msra.mxu0 0.0
  %759 = vmatprep.subr.mxu0 0.0
  %760 = vmatpush2.msra.mxu0 0.0
  %761 = vmatprep.subr.mxu0 0.0
  %762 = vmatpush2.msra.mxu0 0.0
  %763 = vmatprep.subr.mxu0 0.0
  %764 = vmatpush2.msra.mxu0 0.0
  %765 = vmatprep.subr.mxu0 0.0
  %766 = vmatpush2.msra.mxu0 0.0
  %767 = vmatprep.subr.mxu0 0.0
  %768 = vmatpush2.msra.mxu0 0.0
  %769 = vmatprep.subr.mxu0 0.0
  %770 = vmatpush2.msra.mxu0 0.0
  %771 = vmatprep.subr.mxu0 0.0
  %772 = vmatpush2.msra.mxu0 0.0
  %773 = vmatprep.subr.mxu0 0.0
  %774 = vmatpush2.msra.mxu0 0.0
  %775 = vmatprep.subr.mxu0 0.0
  %776 = vmatpush2.msra.mxu0 0.0
  %777 = vmatprep.subr.mxu0 0.0
  %778 = vmatpush2.msra.mxu0 0.0
  %779 = vmatprep.subr.mxu0 0.0
  %780 = vmatpush2.msra.mxu0 0.0
  %781 = vmatprep.subr.mxu0 0.0
  %782 = vmatpush2.msra.mxu0 0.0
  %783 = vmatprep.subr.mxu0 0.0
  %784 = vmatpush2.msra.mxu0 0.0
  %785 = vmatprep.subr.mxu0 0.0
  %786 = vmatpush2.msra.mxu0 0.0
  %787 = vmatprep.subr.mxu0 0.0
  %788 = vmatpush2.msra.mxu0 0.0
  %789 = vmatprep.mubr.f32.mxu0 0.0
  %790 = vmatmul.mubr.f32.gmra.mxu0 %v664
  %v791 = vpop.f32.mrf.mxu0
  %v792 = vadd.f32 %v723, %v791
  %v793 = vpop.f32.mrf.mxu0
  %794 = vmatprep.mubr.f32.mxu0 0.0
  %795 = vmatmul.mubr.f32.gmra.mxu0 %v665
  %v796 = vpop.f32.mrf.mxu0
  %v797 = vadd.f32 %v723, %v796
  %v798 = vpop.f32.mrf.mxu0
  %799 = vmatprep.mubr.f32.mxu0 0.0
  %800 = vmatmul.mubr.f32.gmra.mxu0 %v666
  %v801 = vpop.f32.mrf.mxu0
  %v802 = vadd.f32 %v723, %v801
  %v803 = vpop.f32.mrf.mxu0
  %804 = vmatprep.mubr.f32.mxu0 0.0
  %805 = vmatmul.mubr.f32.gmra.mxu0 %v667
  %v806 = vpop.f32.mrf.mxu0
  %v807 = vadd.f32 %v723, %v806
  %v808 = vpop.f32.mrf.mxu0
  %809 = vmatprep.mubr.f32.mxu0 0.0
  %810 = vmatmul.mubr.f32.gmra.mxu0 %v668
  %v811 = vpop.f32.mrf.mxu0
  %v812 = vadd.f32 %v723, %v811
  %v813 = vpop.f32.mrf.mxu0
  %814 = vmatprep.mubr.f32.mxu0 0.0
  %815 = vmatmul.mubr.f32.gmra.mxu0 %v669
  %v816 = vpop.f32.mrf.mxu0
  %v817 = vadd.f32 %v723, %v816
  %v818 = vpop.f32.mrf.mxu0
  %819 = vmatprep.mubr.f32.mxu0 0.0
  %820 = vmatmul.mubr.f32.gmra.mxu0 %v670
  %v821 = vpop.f32.mrf.mxu0
  %v822 = vadd.f32 %v723, %v821
  %v823 = vpop.f32.mrf.mxu0
  %824 = vmatprep.mubr.f32.mxu0 0.0
  %825 = vmatmul.mubr.f32.gmra.mxu0 %v671
  %v826 = vpop.f32.mrf.mxu0
  %v827 = vadd.f32 %v723, %v826
  %v828 = vpop.f32.mrf.mxu0
  %829 = vmatprep.mubr.f32.mxu0 0.0
  %830 = vmatmul.mubr.f32.gmra.mxu0 %v672
  %v831 = vpop.f32.mrf.mxu0
  %v832 = vadd.f32 %v723, %v831
  %v833 = vpop.f32.mrf.mxu0
  %834 = vmatprep.mubr.f32.mxu0 0.0
  %835 = vmatmul.mubr.f32.gmra.mxu0 %v673
  %v836 = vpop.f32.mrf.mxu0
  %v837 = vadd.f32 %v723, %v836
  %v838 = vpop.f32.mrf.mxu0
  %839 = vmatprep.mubr.f32.mxu0 0.0
  %840 = vmatmul.mubr.f32.gmra.mxu0 %v674
  %v841 = vpop.f32.mrf.mxu0
  %v842 = vadd.f32 %v723, %v841
  %v843 = vpop.f32.mrf.mxu0
  %844 = vmatprep.mubr.f32.mxu0 0.0
  %845 = vmatmul.mubr.f32.gmra.mxu0 %v675
  %v846 = vpop.f32.mrf.mxu0
  %v847 = vadd.f32 %v723, %v846
  %v848 = vpop.f32.mrf.mxu0
  %849 = vmatprep.mubr.f32.mxu0 0.0
  %850 = vmatmul.mubr.f32.gmra.mxu0 %v676
  %v851 = vpop.f32.mrf.mxu0
  %v852 = vadd.f32 %v723, %v851
  %v853 = vpop.f32.mrf.mxu0
  %854 = vmatprep.mubr.f32.mxu0 0.0
  %855 = vmatmul.mubr.f32.gmra.mxu0 %v677
  %v856 = vpop.f32.mrf.mxu0
  %v857 = vadd.f32 %v723, %v856
  %v858 = vpop.f32.mrf.mxu0
  %859 = vmatprep.mubr.f32.mxu0 0.0
  %860 = vmatmul.mubr.f32.gmra.mxu0 %v678
  %v861 = vpop.f32.mrf.mxu0
  %v862 = vadd.f32 %v723, %v861
  %v863 = vpop.f32.mrf.mxu0
  %864 = vmatprep.mubr.f32.mxu0 0.0
  %865 = vmatmul.mubr.f32.gmra.mxu0 %v679
  %v866 = vpop.f32.mrf.mxu0
  %v867 = vadd.f32 %v723, %v866
  %v868 = vpop.f32.mrf.mxu0
  %869 = vmatprep.mubr.f32.mxu0 0.0
  %870 = vmatmul.mubr.f32.gmra.mxu0 %v680
  %v871 = vpop.f32.mrf.mxu0
  %v872 = vadd.f32 %v723, %v871
  %v873 = vpop.f32.mrf.mxu0
  %874 = vmatprep.mubr.f32.mxu0 0.0
  %875 = vmatmul.mubr.f32.gmra.mxu0 %v681
  %v876 = vpop.f32.mrf.mxu0
  %v877 = vadd.f32 %v723, %v876
  %v878 = vpop.f32.mrf.mxu0
  %879 = vmatprep.mubr.f32.mxu0 0.0
  %880 = vmatmul.mubr.f32.gmra.mxu0 %v682
  %v881 = vpop.f32.mrf.mxu0
  %v882 = vadd.f32 %v723, %v881
  %v883 = vpop.f32.mrf.mxu0
  %884 = vmatprep.mubr.f32.mxu0 0.0
  %885 = vmatmul.mubr.f32.gmra.mxu0 %v683
  %v886 = vpop.f32.mrf.mxu0
  %v887 = vadd.f32 %v723, %v886
  %v888 = vpop.f32.mrf.mxu0
  %889 = vmatprep.mubr.f32.mxu0 0.0
  %890 = vmatmul.mubr.f32.gmra.mxu0 %v684
  %v891 = vpop.f32.mrf.mxu0
  %v892 = vadd.f32 %v723, %v891
  %v893 = vpop.f32.mrf.mxu0
  %894 = vmatprep.mubr.f32.mxu0 0.0
  %895 = vmatmul.mubr.f32.gmra.mxu0 %v685
  %v896 = vpop.f32.mrf.mxu0
  %v897 = vadd.f32 %v723, %v896
  %v898 = vpop.f32.mrf.mxu0
  %899 = vmatprep.mubr.f32.mxu0 0.0
  %900 = vmatmul.mubr.f32.gmra.mxu0 %v686
  %v901 = vpop.f32.mrf.mxu0
  %v902 = vadd.f32 %v723, %v901
  %v903 = vpop.f32.mrf.mxu0
  %904 = vmatprep.mubr.f32.mxu0 0.0
  %905 = vmatmul.mubr.f32.gmra.mxu0 %v687
  %v906 = vpop.f32.mrf.mxu0
  %v907 = vadd.f32 %v723, %v906
  %v908 = vpop.f32.mrf.mxu0
  %909 = vmatprep.mubr.f32.mxu0 0.0
  %910 = vmatmul.mubr.f32.gmra.mxu0 %v688
  %v911 = vpop.f32.mrf.mxu0
  %v912 = vadd.f32 %v723, %v911
  %v913 = vpop.f32.mrf.mxu0
  %914 = vmatprep.mubr.f32.mxu0 0.0
  %915 = vmatmul.mubr.f32.gmra.mxu0 %v689
  %v916 = vpop.f32.mrf.mxu0
  %v917 = vadd.f32 %v723, %v916
  %v918 = vpop.f32.mrf.mxu0
  %919 = vmatprep.mubr.f32.mxu0 0.0
  %920 = vmatmul.mubr.f32.gmra.mxu0 %v690
  %v921 = vpop.f32.mrf.mxu0
  %v922 = vadd.f32 %v723, %v921
  %v923 = vpop.f32.mrf.mxu0
  %924 = vmatprep.mubr.f32.mxu0 0.0
  %925 = vmatmul.mubr.f32.gmra.mxu0 %v691
  %v926 = vpop.f32.mrf.mxu0
  %v927 = vadd.f32 %v723, %v926
  %v928 = vpop.f32.mrf.mxu0
  %929 = vmatprep.mubr.f32.mxu0 0.0
  %930 = vmatmul.mubr.f32.gmra.mxu0 %v692
  %v931 = vpop.f32.mrf.mxu0
  %v932 = vadd.f32 %v723, %v931
  %v933 = vpop.f32.mrf.mxu0
  %934 = vmatprep.mubr.f32.mxu0 0.0
  %935 = vmatmul.mubr.f32.gmra.mxu0 %v693
  %v936 = vpop.f32.mrf.mxu0
  %v937 = vadd.f32 %v723, %v936
  %v938 = vpop.f32.mrf.mxu0
  %939 = vmatprep.mubr.f32.mxu0 0.0
  %940 = vmatmul.mubr.f32.gmra.mxu0 %v694
  %v941 = vpop.f32.mrf.mxu0
  %v942 = vadd.f32 %v723, %v941
  %v943 = vpop.f32.mrf.mxu0
  %944 = vmatprep.mubr.f32.mxu0 0.0
  %945 = vmatmul.mubr.f32.gmra.mxu0 %v695
  %v946 = vpop.f32.mrf.mxu0
  %v947 = vadd.f32 %v723, %v946
  %v948 = vpop.f32.mrf.mxu0
  %949 = vmatprep.mubr.f32.mxu0 0.0
  %950 = vmatmul.mubr.f32.gmra.mxu0 %v696
  %v951 = vpop.f32.mrf.mxu0
  %v952 = vadd.f32 %v723, %v951
  %v953 = vpop.f32.mrf.mxu0
  %954 = vmatprep.mubr.f32.mxu0 0.0
  %955 = vmatmul.mubr.f32.gmra.mxu0 %v697
  %v956 = vpop.f32.mrf.mxu0
  %v957 = vadd.f32 %v723, %v956
  %v958 = vpop.f32.mrf.mxu0
  %959 = vmatprep.mubr.f32.mxu0 0.0
  %960 = vmatmul.mubr.f32.gmra.mxu0 %v698
  %v961 = vpop.f32.mrf.mxu0
  %v962 = vadd.f32 %v723, %v961
  %v963 = vpop.f32.mrf.mxu0
  %964 = vmatprep.mubr.f32.mxu0 0.0
  %965 = vmatmul.mubr.f32.gmra.mxu0 %v699
  %v966 = vpop.f32.mrf.mxu0
  %v967 = vadd.f32 %v723, %v966
  %v968 = vpop.f32.mrf.mxu0
  %969 = vmatprep.mubr.f32.mxu0 0.0
  %970 = vmatmul.mubr.f32.gmra.mxu0 %v700
  %v971 = vpop.f32.mrf.mxu0
  %v972 = vadd.f32 %v723, %v971
  %v973 = vpop.f32.mrf.mxu0
  %974 = vmatprep.mubr.f32.mxu0 0.0
  %975 = vmatmul.mubr.f32.gmra.mxu0 %v701
  %v976 = vpop.f32.mrf.mxu0
  %v977 = vadd.f32 %v723, %v976
  %v978 = vpop.f32.mrf.mxu0
  %979 = vdwg.mxu0
  %v980 = vmax.f32 %v792, 0.0
  %v981 = vmax.f32 %v797, 0.0
  %v982 = vmax.f32 %v802, 0.0
  %v983 = vmax.f32 %v807, 0.0
  %v984 = vmax.f32 %v812, 0.0
  %v985 = vmax.f32 %v817, 0.0
  %v986 = vmax.f32 %v822, 0.0
  %v987 = vmax.f32 %v827, 0.0
  %v988 = vmax.f32 %v832, 0.0
  %v989 = vmax.f32 %v837, 0.0
  %v990 = vmax.f32 %v842, 0.0
  %v991 = vmax.f32 %v847, 0.0
  %v992 = vmax.f32 %v852, 0.0
  %v993 = vmax.f32 %v857, 0.0
  %v994 = vmax.f32 %v862, 0.0
  %v995 = vmax.f32 %v867, 0.0
  %v996 = vmax.f32 %v872, 0.0
  %v997 = vmax.f32 %v877, 0.0
  %v998 = vmax.f32 %v882, 0.0
  %v999 = vmax.f32 %v887, 0.0
  %v1000 = vmax.f32 %v892, 0.0
  %v1001 = vmax.f32 %v897, 0.0
  %v1002 = vmax.f32 %v902, 0.0
  %v1003 = vmax.f32 %v907, 0.0
  %v1004 = vmax.f32 %v912, 0.0
  %v1005 = vmax.f32 %v917, 0.0
  %v1006 = vmax.f32 %v922, 0.0
  %v1007 = vmax.f32 %v927, 0.0
  %v1008 = vmax.f32 %v932, 0.0
  %v1009 = vmax.f32 %v937, 0.0
  %v1010 = vmax.f32 %v942, 0.0
  %v1011 = vmax.f32 %v947, 0.0
  %v1012 = vmax.f32 %v952, 0.0
  %v1013 = vmax.f32 %v957, 0.0
  %v1014 = vmax.f32 %v962, 0.0
  %v1015 = vmax.f32 %v967, 0.0
  %v1016 = vmax.f32 %v972, 0.0
  %v1017 = vmax.f32 %v977, 0.0
  %v1018 = vld [vmem:[%s7] sm:$0xff]
  %v1019 = vld [vmem:[%s7 + $0x8] sm:$0xff]
  %v1020 = vld [vmem:[%s7 + $0x10] sm:$0xff]
  %v1021 = vld [vmem:[%s7 + $0x18] sm:$0xff]
  %v1022 = vld [vmem:[%s7 + $0x20] sm:$0xff]
  %v1023 = vld [vmem:[%s7 + $0x28] sm:$0xff]
  %v1024 = vld [vmem:[%s7 + $0x30] sm:$0xff]
  %v1025 = vld [vmem:[%s7 + $0x38] sm:$0xff]
  %v1026 = vld [vmem:[%s7 + $0x40] sm:$0xff]
  %v1027 = vld [vmem:[%s7 + $0x48] sm:$0xff]
  %v1028 = vld [vmem:[%s7 + $0x50] sm:$0xff]
  %v1029 = vld [vmem:[%s7 + $0x58] sm:$0xff]
  %v1030 = vld [vmem:[%s7 + $0x60] sm:$0xff]
  %v1031 = vld [vmem:[%s7 + $0x68] sm:$0xff]
  %v1032 = vld [vmem:[%s7 + $0x70] sm:$0xff]
  %v1033 = vld [vmem:[%s7 + $0x78] sm:$0xff]
  %v1034 = vld [vmem:[%s8] sm:$0x1]
  %v1036 = vlaneseq
  %v1037 = vshrl.u32 %v1036, 7
  %v1038 = vsub.s32 0, %v1037
  %v1039 = vrot.slane %v1034, %v1038
  %1041 = vmatprep.subr.mxu0 0.0
  %1042 = vmatpush1.msra.mxu0 %v1033
  %1043 = vmatprep.subr.mxu0 0.0
  %1044 = vmatpush1.msra.mxu0 %v1032
  %1045 = vmatprep.subr.mxu0 0.0
  %1046 = vmatpush1.msra.mxu0 %v1031
  %1047 = vmatprep.subr.mxu0 0.0
  %1048 = vmatpush1.msra.mxu0 %v1030
  %1049 = vmatprep.subr.mxu0 0.0
  %1050 = vmatpush1.msra.mxu0 %v1029
  %1051 = vmatprep.subr.mxu0 0.0
  %1052 = vmatpush1.msra.mxu0 %v1028
  %1053 = vmatprep.subr.mxu0 0.0
  %1054 = vmatpush1.msra.mxu0 %v1027
  %1055 = vmatprep.subr.mxu0 0.0
  %1056 = vmatpush1.msra.mxu0 %v1026
  %1057 = vmatprep.subr.mxu0 0.0
  %1058 = vmatpush1.msra.mxu0 %v1025
  %1059 = vmatprep.subr.mxu0 0.0
  %1060 = vmatpush1.msra.mxu0 %v1024
  %1061 = vmatprep.subr.mxu0 0.0
  %1062 = vmatpush1.msra.mxu0 %v1023
  %1063 = vmatprep.subr.mxu0 0.0
  %1064 = vmatpush1.msra.mxu0 %v1022
  %1065 = vmatprep.subr.mxu0 0.0
  %1066 = vmatpush1.msra.mxu0 %v1021
  %1067 = vmatprep.subr.mxu0 0.0
  %1068 = vmatpush1.msra.mxu0 %v1020
  %1069 = vmatprep.subr.mxu0 0.0
  %1070 = vmatpush1.msra.mxu0 %v1019
  %1071 = vmatprep.subr.mxu0 0.0
  %1072 = vmatpush1.msra.mxu0 %v1018
  %1073 = vmatprep.subr.mxu0 0.0
  %1074 = vmatpush2.msra.mxu0 0.0
  %1075 = vmatprep.subr.mxu0 0.0
  %1076 = vmatpush2.msra.mxu0 0.0
  %1077 = vmatprep.subr.mxu0 0.0
  %1078 = vmatpush2.msra.mxu0 0.0
  %1079 = vmatprep.subr.mxu0 0.0
  %1080 = vmatpush2.msra.mxu0 0.0
  %1081 = vmatprep.subr.mxu0 0.0
  %1082 = vmatpush2.msra.mxu0 0.0
  %1083 = vmatprep.subr.mxu0 0.0
  %1084 = vmatpush2.msra.mxu0 0.0
  %1085 = vmatprep.subr.mxu0 0.0
  %1086 = vmatpush2.msra.mxu0 0.0
  %1087 = vmatprep.subr.mxu0 0.0
  %1088 = vmatpush2.msra.mxu0 0.0
  %1089 = vmatprep.subr.mxu0 0.0
  %1090 = vmatpush2.msra.mxu0 0.0
  %1091 = vmatprep.subr.mxu0 0.0
  %1092 = vmatpush2.msra.mxu0 0.0
  %1093 = vmatprep.subr.mxu0 0.0
  %1094 = vmatpush2.msra.mxu0 0.0
  %1095 = vmatprep.subr.mxu0 0.0
  %1096 = vmatpush2.msra.mxu0 0.0
  %1097 = vmatprep.subr.mxu0 0.0
  %1098 = vmatpush2.msra.mxu0 0.0
  %1099 = vmatprep.subr.mxu0 0.0
  %1100 = vmatpush2.msra.mxu0 0.0
  %1101 = vmatprep.subr.mxu0 0.0
  %1102 = vmatpush2.msra.mxu0 0.0
  %1103 = vmatprep.subr.mxu0 0.0
  %1104 = vmatpush2.msra.mxu0 0.0
  %1105 = vmatprep.mubr.f32.mxu0 0.0
  %1106 = vmatmul.mubr.f32.gmra.mxu0 %v980
  %v1107 = vpop.f32.mrf.mxu0
  %v1108 = vadd.f32 %v1039, %v1107
  %v1109 = vpop.f32.mrf.mxu0
  %1110 = vmatprep.mubr.f32.mxu0 0.0
  %1111 = vmatmul.mubr.f32.gmra.mxu0 %v981
  %v1112 = vpop.f32.mrf.mxu0
  %v1113 = vadd.f32 %v1039, %v1112
  %v1114 = vpop.f32.mrf.mxu0
  %1115 = vmatprep.mubr.f32.mxu0 0.0
  %1116 = vmatmul.mubr.f32.gmra.mxu0 %v982
  %v1117 = vpop.f32.mrf.mxu0
  %v1118 = vadd.f32 %v1039, %v1117
  %v1119 = vpop.f32.mrf.mxu0
  %1120 = vmatprep.mubr.f32.mxu0 0.0
  %1121 = vmatmul.mubr.f32.gmra.mxu0 %v983
  %v1122 = vpop.f32.mrf.mxu0
  %v1123 = vadd.f32 %v1039, %v1122
  %v1124 = vpop.f32.mrf.mxu0
  %1125 = vmatprep.mubr.f32.mxu0 0.0
  %1126 = vmatmul.mubr.f32.gmra.mxu0 %v984
  %v1127 = vpop.f32.mrf.mxu0
  %v1128 = vadd.f32 %v1039, %v1127
  %v1129 = vpop.f32.mrf.mxu0
  %1130 = vmatprep.mubr.f32.mxu0 0.0
  %1131 = vmatmul.mubr.f32.gmra.mxu0 %v985
  %v1132 = vpop.f32.mrf.mxu0
  %v1133 = vadd.f32 %v1039, %v1132
  %v1134 = vpop.f32.mrf.mxu0
  %1135 = vmatprep.mubr.f32.mxu0 0.0
  %1136 = vmatmul.mubr.f32.gmra.mxu0 %v986
  %v1137 = vpop.f32.mrf.mxu0
  %v1138 = vadd.f32 %v1039, %v1137
  %v1139 = vpop.f32.mrf.mxu0
  %1140 = vmatprep.mubr.f32.mxu0 0.0
  %1141 = vmatmul.mubr.f32.gmra.mxu0 %v987
  %v1142 = vpop.f32.mrf.mxu0
  %v1143 = vadd.f32 %v1039, %v1142
  %v1144 = vpop.f32.mrf.mxu0
  %1145 = vmatprep.mubr.f32.mxu0 0.0
  %1146 = vmatmul.mubr.f32.gmra.mxu0 %v988
  %v1147 = vpop.f32.mrf.mxu0
  %v1148 = vadd.f32 %v1039, %v1147
  %v1149 = vpop.f32.mrf.mxu0
  %1150 = vmatprep.mubr.f32.mxu0 0.0
  %1151 = vmatmul.mubr.f32.gmra.mxu0 %v989
  %v1152 = vpop.f32.mrf.mxu0
  %v1153 = vadd.f32 %v1039, %v1152
  %v1154 = vpop.f32.mrf.mxu0
  %1155 = vmatprep.mubr.f32.mxu0 0.0
  %1156 = vmatmul.mubr.f32.gmra.mxu0 %v990
  %v1157 = vpop.f32.mrf.mxu0
  %v1158 = vadd.f32 %v1039, %v1157
  %v1159 = vpop.f32.mrf.mxu0
  %1160 = vmatprep.mubr.f32.mxu0 0.0
  %1161 = vmatmul.mubr.f32.gmra.mxu0 %v991
  %v1162 = vpop.f32.mrf.mxu0
  %v1163 = vadd.f32 %v1039, %v1162
  %v1164 = vpop.f32.mrf.mxu0
  %1165 = vmatprep.mubr.f32.mxu0 0.0
  %1166 = vmatmul.mubr.f32.gmra.mxu0 %v992
  %v1167 = vpop.f32.mrf.mxu0
  %v1168 = vadd.f32 %v1039, %v1167
  %v1169 = vpop.f32.mrf.mxu0
  %1170 = vmatprep.mubr.f32.mxu0 0.0
  %1171 = vmatmul.mubr.f32.gmra.mxu0 %v993
  %v1172 = vpop.f32.mrf.mxu0
  %v1173 = vadd.f32 %v1039, %v1172
  %v1174 = vpop.f32.mrf.mxu0
  %1175 = vmatprep.mubr.f32.mxu0 0.0
  %1176 = vmatmul.mubr.f32.gmra.mxu0 %v994
  %v1177 = vpop.f32.mrf.mxu0
  %v1178 = vadd.f32 %v1039, %v1177
  %v1179 = vpop.f32.mrf.mxu0
  %1180 = vmatprep.mubr.f32.mxu0 0.0
  %1181 = vmatmul.mubr.f32.gmra.mxu0 %v995
  %v1182 = vpop.f32.mrf.mxu0
  %v1183 = vadd.f32 %v1039, %v1182
  %v1184 = vpop.f32.mrf.mxu0
  %1185 = vmatprep.mubr.f32.mxu0 0.0
  %1186 = vmatmul.mubr.f32.gmra.mxu0 %v996
  %v1187 = vpop.f32.mrf.mxu0
  %v1188 = vadd.f32 %v1039, %v1187
  %v1189 = vpop.f32.mrf.mxu0
  %1190 = vmatprep.mubr.f32.mxu0 0.0
  %1191 = vmatmul.mubr.f32.gmra.mxu0 %v997
  %v1192 = vpop.f32.mrf.mxu0
  %v1193 = vadd.f32 %v1039, %v1192
  %v1194 = vpop.f32.mrf.mxu0
  %1195 = vmatprep.mubr.f32.mxu0 0.0
  %1196 = vmatmul.mubr.f32.gmra.mxu0 %v998
  %v1197 = vpop.f32.mrf.mxu0
  %v1198 = vadd.f32 %v1039, %v1197
  %v1199 = vpop.f32.mrf.mxu0
  %1200 = vmatprep.mubr.f32.mxu0 0.0
  %1201 = vmatmul.mubr.f32.gmra.mxu0 %v999
  %v1202 = vpop.f32.mrf.mxu0
  %v1203 = vadd.f32 %v1039, %v1202
  %v1204 = vpop.f32.mrf.mxu0
  %1205 = vmatprep.mubr.f32.mxu0 0.0
  %1206 = vmatmul.mubr.f32.gmra.mxu0 %v1000
  %v1207 = vpop.f32.mrf.mxu0
  %v1208 = vadd.f32 %v1039, %v1207
  %v1209 = vpop.f32.mrf.mxu0
  %1210 = vmatprep.mubr.f32.mxu0 0.0
  %1211 = vmatmul.mubr.f32.gmra.mxu0 %v1001
  %v1212 = vpop.f32.mrf.mxu0
  %v1213 = vadd.f32 %v1039, %v1212
  %v1214 = vpop.f32.mrf.mxu0
  %1215 = vmatprep.mubr.f32.mxu0 0.0
  %1216 = vmatmul.mubr.f32.gmra.mxu0 %v1002
  %v1217 = vpop.f32.mrf.mxu0
  %v1218 = vadd.f32 %v1039, %v1217
  %v1219 = vpop.f32.mrf.mxu0
  %1220 = vmatprep.mubr.f32.mxu0 0.0
  %1221 = vmatmul.mubr.f32.gmra.mxu0 %v1003
  %v1222 = vpop.f32.mrf.mxu0
  %v1223 = vadd.f32 %v1039, %v1222
  %v1224 = vpop.f32.mrf.mxu0
  %1225 = vmatprep.mubr.f32.mxu0 0.0
  %1226 = vmatmul.mubr.f32.gmra.mxu0 %v1004
  %v1227 = vpop.f32.mrf.mxu0
  %v1228 = vadd.f32 %v1039, %v1227
  %v1229 = vpop.f32.mrf.mxu0
  %1230 = vmatprep.mubr.f32.mxu0 0.0
  %1231 = vmatmul.mubr.f32.gmra.mxu0 %v1005
  %v1232 = vpop.f32.mrf.mxu0
  %v1233 = vadd.f32 %v1039, %v1232
  %v1234 = vpop.f32.mrf.mxu0
  %1235 = vmatprep.mubr.f32.mxu0 0.0
  %1236 = vmatmul.mubr.f32.gmra.mxu0 %v1006
  %v1237 = vpop.f32.mrf.mxu0
  %v1238 = vadd.f32 %v1039, %v1237
  %v1239 = vpop.f32.mrf.mxu0
  %1240 = vmatprep.mubr.f32.mxu0 0.0
  %1241 = vmatmul.mubr.f32.gmra.mxu0 %v1007
  %v1242 = vpop.f32.mrf.mxu0
  %v1243 = vadd.f32 %v1039, %v1242
  %v1244 = vpop.f32.mrf.mxu0
  %1245 = vmatprep.mubr.f32.mxu0 0.0
  %1246 = vmatmul.mubr.f32.gmra.mxu0 %v1008
  %v1247 = vpop.f32.mrf.mxu0
  %v1248 = vadd.f32 %v1039, %v1247
  %v1249 = vpop.f32.mrf.mxu0
  %1250 = vmatprep.mubr.f32.mxu0 0.0
  %1251 = vmatmul.mubr.f32.gmra.mxu0 %v1009
  %v1252 = vpop.f32.mrf.mxu0
  %v1253 = vadd.f32 %v1039, %v1252
  %v1254 = vpop.f32.mrf.mxu0
  %1255 = vmatprep.mubr.f32.mxu0 0.0
  %1256 = vmatmul.mubr.f32.gmra.mxu0 %v1010
  %v1257 = vpop.f32.mrf.mxu0
  %v1258 = vadd.f32 %v1039, %v1257
  %v1259 = vpop.f32.mrf.mxu0
  %1260 = vmatprep.mubr.f32.mxu0 0.0
  %1261 = vmatmul.mubr.f32.gmra.mxu0 %v1011
  %v1262 = vpop.f32.mrf.mxu0
  %v1263 = vadd.f32 %v1039, %v1262
  %v1264 = vpop.f32.mrf.mxu0
  %1265 = vmatprep.mubr.f32.mxu0 0.0
  %1266 = vmatmul.mubr.f32.gmra.mxu0 %v1012
  %v1267 = vpop.f32.mrf.mxu0
  %v1268 = vadd.f32 %v1039, %v1267
  %v1269 = vpop.f32.mrf.mxu0
  %1270 = vmatprep.mubr.f32.mxu0 0.0
  %1271 = vmatmul.mubr.f32.gmra.mxu0 %v1013
  %v1272 = vpop.f32.mrf.mxu0
  %v1273 = vadd.f32 %v1039, %v1272
  %v1274 = vpop.f32.mrf.mxu0
  %1275 = vmatprep.mubr.f32.mxu0 0.0
  %1276 = vmatmul.mubr.f32.gmra.mxu0 %v1014
  %v1277 = vpop.f32.mrf.mxu0
  %v1278 = vadd.f32 %v1039, %v1277
  %v1279 = vpop.f32.mrf.mxu0
  %1280 = vmatprep.mubr.f32.mxu0 0.0
  %1281 = vmatmul.mubr.f32.gmra.mxu0 %v1015
  %v1282 = vpop.f32.mrf.mxu0
  %v1283 = vadd.f32 %v1039, %v1282
  %v1284 = vpop.f32.mrf.mxu0
  %1285 = vmatprep.mubr.f32.mxu0 0.0
  %1286 = vmatmul.mubr.f32.gmra.mxu0 %v1016
  %v1287 = vpop.f32.mrf.mxu0
  %v1288 = vadd.f32 %v1039, %v1287
  %v1289 = vpop.f32.mrf.mxu0
  %1290 = vmatprep.mubr.f32.mxu0 0.0
  %1291 = vmatmul.mubr.f32.gmra.mxu0 %v1017
  %v1292 = vpop.f32.mrf.mxu0
  %v1293 = vadd.f32 %v1039, %v1292
  %v1294 = vpop.f32.mrf.mxu0
  %1295 = vdwg.mxu0
  %v1296 = vsub.f32 0.0, %v1108
  %v1297 = vsub.f32 0.0, %v1113
  %v1298 = vsub.f32 0.0, %v1118
  %v1299 = vsub.f32 0.0, %v1123
  %v1300 = vsub.f32 0.0, %v1128
  %v1301 = vsub.f32 0.0, %v1133
  %v1302 = vsub.f32 0.0, %v1138
  %v1303 = vsub.f32 0.0, %v1143
  %v1304 = vsub.f32 0.0, %v1148
  %v1305 = vsub.f32 0.0, %v1153
  %v1306 = vsub.f32 0.0, %v1158
  %v1307 = vsub.f32 0.0, %v1163
  %v1308 = vsub.f32 0.0, %v1168
  %v1309 = vsub.f32 0.0, %v1173
  %v1310 = vsub.f32 0.0, %v1178
  %v1311 = vsub.f32 0.0, %v1183
  %v1312 = vsub.f32 0.0, %v1188
  %v1313 = vsub.f32 0.0, %v1193
  %v1314 = vsub.f32 0.0, %v1198
  %v1315 = vsub.f32 0.0, %v1203
  %v1316 = vsub.f32 0.0, %v1208
  %v1317 = vsub.f32 0.0, %v1213
  %v1318 = vsub.f32 0.0, %v1218
  %v1319 = vsub.f32 0.0, %v1223
  %v1320 = vsub.f32 0.0, %v1228
  %v1321 = vsub.f32 0.0, %v1233
  %v1322 = vsub.f32 0.0, %v1238
  %v1323 = vsub.f32 0.0, %v1243
  %v1324 = vsub.f32 0.0, %v1248
  %v1325 = vsub.f32 0.0, %v1253
  %v1326 = vsub.f32 0.0, %v1258
  %v1327 = vsub.f32 0.0, %v1263
  %v1328 = vsub.f32 0.0, %v1268
  %v1329 = vsub.f32 0.0, %v1273
  %v1330 = vsub.f32 0.0, %v1278
  %v1331 = vsub.f32 0.0, %v1283
  %v1332 = vsub.f32 0.0, %v1288
  %v1333 = vsub.f32 0.0, %v1293
  %v1334 = vmul.f32 %v1296, 1.442695
  %v1335 = vpow.pop %v1334
  %v1336 = vmul.f32 %v1297, 1.442695
  %v1337 = vpow.pop %v1336
  %v1338 = vmul.f32 %v1298, 1.442695
  %v1339 = vpow.pop %v1338
  %v1340 = vmul.f32 %v1299, 1.442695
  %v1341 = vpow.pop %v1340
  %v1342 = vmul.f32 %v1300, 1.442695
  %v1343 = vpow.pop %v1342
  %v1344 = vmul.f32 %v1301, 1.442695
  %v1345 = vpow.pop %v1344
  %v1346 = vmul.f32 %v1302, 1.442695
  %v1347 = vpow.pop %v1346
  %v1348 = vmul.f32 %v1303, 1.442695
  %v1349 = vpow.pop %v1348
  %v1350 = vmul.f32 %v1304, 1.442695
  %v1351 = vpow.pop %v1350
  %v1352 = vmul.f32 %v1305, 1.442695
  %v1353 = vpow.pop %v1352
  %v1354 = vmul.f32 %v1306, 1.442695
  %v1355 = vpow.pop %v1354
  %v1356 = vmul.f32 %v1307, 1.442695
  %v1357 = vpow.pop %v1356
  %v1358 = vmul.f32 %v1308, 1.442695
  %v1359 = vpow.pop %v1358
  %v1360 = vmul.f32 %v1309, 1.442695
  %v1361 = vpow.pop %v1360
  %v1362 = vmul.f32 %v1310, 1.442695
  %v1363 = vpow.pop %v1362
  %v1364 = vmul.f32 %v1311, 1.442695
  %v1365 = vpow.pop %v1364
  %v1366 = vmul.f32 %v1312, 1.442695
  %v1367 = vpow.pop %v1366
  %v1368 = vmul.f32 %v1313, 1.442695
  %v1369 = vpow.pop %v1368
  %v1370 = vmul.f32 %v1314, 1.442695
  %v1371 = vpow.pop %v1370
  %v1372 = vmul.f32 %v1315, 1.442695
  %v1373 = vpow.pop %v1372
  %v1374 = vmul.f32 %v1316, 1.442695
  %v1375 = vpow.pop %v1374
  %v1376 = vmul.f32 %v1317, 1.442695
  %v1377 = vpow.pop %v1376
  %v1378 = vmul.f32 %v1318, 1.442695
  %v1379 = vpow.pop %v1378
  %v1380 = vmul.f32 %v1319, 1.442695
  %v1381 = vpow.pop %v1380
  %v1382 = vmul.f32 %v1320, 1.442695
  %v1383 = vpow.pop %v1382
  %v1384 = vmul.f32 %v1321, 1.442695
  %v1385 = vpow.pop %v1384
  %v1386 = vmul.f32 %v1322, 1.442695
  %v1387 = vpow.pop %v1386
  %v1388 = vmul.f32 %v1323, 1.442695
  %v1389 = vpow.pop %v1388
  %v1390 = vmul.f32 %v1324, 1.442695
  %v1391 = vpow.pop %v1390
  %v1392 = vmul.f32 %v1325, 1.442695
  %v1393 = vpow.pop %v1392
  %v1394 = vmul.f32 %v1326, 1.442695
  %v1395 = vpow.pop %v1394
  %v1396 = vmul.f32 %v1327, 1.442695
  %v1397 = vpow.pop %v1396
  %v1398 = vmul.f32 %v1328, 1.442695
  %v1399 = vpow.pop %v1398
  %v1400 = vmul.f32 %v1329, 1.442695
  %v1401 = vpow.pop %v1400
  %v1402 = vmul.f32 %v1330, 1.442695
  %v1403 = vpow.pop %v1402
  %v1404 = vmul.f32 %v1331, 1.442695
  %v1405 = vpow.pop %v1404
  %v1406 = vmul.f32 %v1332, 1.442695
  %v1407 = vpow.pop %v1406
  %v1408 = vmul.f32 %v1333, 1.442695
  %v1409 = vpow.pop %v1408
  %v1410 = vadd.f32 %v1335, 1.0
  %v1411 = vadd.f32 %v1337, 1.0
  %v1412 = vadd.f32 %v1339, 1.0
  %v1413 = vadd.f32 %v1341, 1.0
  %v1414 = vadd.f32 %v1343, 1.0
  %v1415 = vadd.f32 %v1345, 1.0
  %v1416 = vadd.f32 %v1347, 1.0
  %v1417 = vadd.f32 %v1349, 1.0
  %v1418 = vadd.f32 %v1351, 1.0
  %v1419 = vadd.f32 %v1353, 1.0
  %v1420 = vadd.f32 %v1355, 1.0
  %v1421 = vadd.f32 %v1357, 1.0
  %v1422 = vadd.f32 %v1359, 1.0
  %v1423 = vadd.f32 %v1361, 1.0
  %v1424 = vadd.f32 %v1363, 1.0
  %v1425 = vadd.f32 %v1365, 1.0
  %v1426 = vadd.f32 %v1367, 1.0
  %v1427 = vadd.f32 %v1369, 1.0
  %v1428 = vadd.f32 %v1371, 1.0
  %v1429 = vadd.f32 %v1373, 1.0
  %v1430 = vadd.f32 %v1375, 1.0
  %v1431 = vadd.f32 %v1377, 1.0
  %v1432 = vadd.f32 %v1379, 1.0
  %v1433 = vadd.f32 %v1381, 1.0
  %v1434 = vadd.f32 %v1383, 1.0
  %v1435 = vadd.f32 %v1385, 1.0
  %v1436 = vadd.f32 %v1387, 1.0
  %v1437 = vadd.f32 %v1389, 1.0
  %v1438 = vadd.f32 %v1391, 1.0
  %v1439 = vadd.f32 %v1393, 1.0
  %v1440 = vadd.f32 %v1395, 1.0
  %v1441 = vadd.f32 %v1397, 1.0
  %v1442 = vadd.f32 %v1399, 1.0
  %v1443 = vadd.f32 %v1401, 1.0
  %v1444 = vadd.f32 %v1403, 1.0
  %v1445 = vadd.f32 %v1405, 1.0
  %v1446 = vadd.f32 %v1407, 1.0
  %v1447 = vadd.f32 %v1409, 1.0
  %v1448 = vrcp.pop %v1410
  %v1449 = vmul.f32 1.0, %v1448
  %v1450 = vrcp.pop %v1411
  %v1451 = vmul.f32 1.0, %v1450
  %v1452 = vrcp.pop %v1412
  %v1453 = vmul.f32 1.0, %v1452
  %v1454 = vrcp.pop %v1413
  %v1455 = vmul.f32 1.0, %v1454
  %v1456 = vrcp.pop %v1414
  %v1457 = vmul.f32 1.0, %v1456
  %v1458 = vrcp.pop %v1415
  %v1459 = vmul.f32 1.0, %v1458
  %v1460 = vrcp.pop %v1416
  %v1461 = vmul.f32 1.0, %v1460
  %v1462 = vrcp.pop %v1417
  %v1463 = vmul.f32 1.0, %v1462
  %v1464 = vrcp.pop %v1418
  %v1465 = vmul.f32 1.0, %v1464
  %v1466 = vrcp.pop %v1419
  %v1467 = vmul.f32 1.0, %v1466
  %v1468 = vrcp.pop %v1420
  %v1469 = vmul.f32 1.0, %v1468
  %v1470 = vrcp.pop %v1421
  %v1471 = vmul.f32 1.0, %v1470
  %v1472 = vrcp.pop %v1422
  %v1473 = vmul.f32 1.0, %v1472
  %v1474 = vrcp.pop %v1423
  %v1475 = vmul.f32 1.0, %v1474
  %v1476 = vrcp.pop %v1424
  %v1477 = vmul.f32 1.0, %v1476
  %v1478 = vrcp.pop %v1425
  %v1479 = vmul.f32 1.0, %v1478
  %v1480 = vrcp.pop %v1426
  %v1481 = vmul.f32 1.0, %v1480
  %v1482 = vrcp.pop %v1427
  %v1483 = vmul.f32 1.0, %v1482
  %v1484 = vrcp.pop %v1428
  %v1485 = vmul.f32 1.0, %v1484
  %v1486 = vrcp.pop %v1429
  %v1487 = vmul.f32 1.0, %v1486
  %v1488 = vrcp.pop %v1430
  %v1489 = vmul.f32 1.0, %v1488
  %v1490 = vrcp.pop %v1431
  %v1491 = vmul.f32 1.0, %v1490
  %v1492 = vrcp.pop %v1432
  %v1493 = vmul.f32 1.0, %v1492
  %v1494 = vrcp.pop %v1433
  %v1495 = vmul.f32 1.0, %v1494
  %v1496 = vrcp.pop %v1434
  %v1497 = vmul.f32 1.0, %v1496
  %v1498 = vrcp.pop %v1435
  %v1499 = vmul.f32 1.0, %v1498
  %v1500 = vrcp.pop %v1436
  %v1501 = vmul.f32 1.0, %v1500
  %v1502 = vrcp.pop %v1437
  %v1503 = vmul.f32 1.0, %v1502
  %v1504 = vrcp.pop %v1438
  %v1505 = vmul.f32 1.0, %v1504
  %v1506 = vrcp.pop %v1439
  %v1507 = vmul.f32 1.0, %v1506
  %v1508 = vrcp.pop %v1440
  %v1509 = vmul.f32 1.0, %v1508
  %v1510 = vrcp.pop %v1441
  %v1511 = vmul.f32 1.0, %v1510
  %v1512 = vrcp.pop %v1442
  %v1513 = vmul.f32 1.0, %v1512
  %v1514 = vrcp.pop %v1443
  %v1515 = vmul.f32 1.0, %v1514
  %v1516 = vrcp.pop %v1444
  %v1517 = vmul.f32 1.0, %v1516
  %v1518 = vrcp.pop %v1445
  %v1519 = vmul.f32 1.0, %v1518
  %v1520 = vrcp.pop %v1446
  %v1521 = vmul.f32 1.0, %v1520
  %v1522 = vrcp.pop %v1447
  %v1523 = vmul.f32 1.0, %v1522
  %1524 = vst [vmem:[%s9] sm:$0xff] %v1449
  %1525 = vst [vmem:[%s9 + $0x8] sm:$0xff] %v1451
  %1526 = vst [vmem:[%s9 + $0x10] sm:$0xff] %v1453
  %1527 = vst [vmem:[%s9 + $0x18] sm:$0xff] %v1455
  %1528 = vst [vmem:[%s9 + $0x20] sm:$0xff] %v1457
  %1529 = vst [vmem:[%s9 + $0x28] sm:$0xff] %v1459
  %1530 = vst [vmem:[%s9 + $0x30] sm:$0xff] %v1461
  %1531 = vst [vmem:[%s9 + $0x38] sm:$0xff] %v1463
  %1532 = vst [vmem:[%s9 + $0x40] sm:$0xff] %v1465
  %1533 = vst [vmem:[%s9 + $0x48] sm:$0xff] %v1467
  %1534 = vst [vmem:[%s9 + $0x50] sm:$0xff] %v1469
  %1535 = vst [vmem:[%s9 + $0x58] sm:$0xff] %v1471
  %1536 = vst [vmem:[%s9 + $0x60] sm:$0xff] %v1473
  %1537 = vst [vmem:[%s9 + $0x68] sm:$0xff] %v1475
  %1538 = vst [vmem:[%s9 + $0x70] sm:$0xff] %v1477
  %1539 = vst [vmem:[%s9 + $0x78] sm:$0xff] %v1479
  %1540 = vst [vmem:[%s9 + $0x80] sm:$0xff] %v1481
  %1541 = vst [vmem:[%s9 + $0x88] sm:$0xff] %v1483
  %1542 = vst [vmem:[%s9 + $0x90] sm:$0xff] %v1485
  %1543 = vst [vmem:[%s9 + $0x98] sm:$0xff] %v1487
  %1544 = vst [vmem:[%s9 + $0xa0] sm:$0xff] %v1489
  %1545 = vst [vmem:[%s9 + $0xa8] sm:$0xff] %v1491
  %1546 = vst [vmem:[%s9 + $0xb0] sm:$0xff] %v1493
  %1547 = vst [vmem:[%s9 + $0xb8] sm:$0xff] %v1495
  %1548 = vst [vmem:[%s9 + $0xc0] sm:$0xff] %v1497
  %1549 = vst [vmem:[%s9 + $0xc8] sm:$0xff] %v1499
  %1550 = vst [vmem:[%s9 + $0xd0] sm:$0xff] %v1501
  %1551 = vst [vmem:[%s9 + $0xd8] sm:$0xff] %v1503
  %1552 = vst [vmem:[%s9 + $0xe0] sm:$0xff] %v1505
  %1553 = vst [vmem:[%s9 + $0xe8] sm:$0xff] %v1507
  %1554 = vst [vmem:[%s9 + $0xf0] sm:$0xff] %v1509
  %1555 = vst [vmem:[%s9 + $0xf8] sm:$0xff] %v1511
  %1556 = vst [vmem:[%s9 + $0x100] sm:$0xff] %v1513
  %1557 = vst [vmem:[%s9 + $0x108] sm:$0xff] %v1515
  %1558 = vst [vmem:[%s9 + $0x110] sm:$0xff] %v1517
  %1559 = vst [vmem:[%s9 + $0x118] sm:$0xff] %v1519
  %1560 = vst [vmem:[%s9 + $0x120] sm:$0xff] %v1521
  %1561 = vst [vmem:[%s9 + $0x128] sm:$0xff] %v1523
  // Predicated region
  $region38: #{logistic_regression_forward.1} parent=0 // pred_check
    _
  $region39: #{logistic_regression_forward.1} parent=0 // pred_check_branch
    %1563 = sbr.rel (0) target = $region41
  $region40: #{logistic_regression_forward.1} parent=0 // pred_region
    _
  $region41: #{logistic_regression_forward.1} parent=0 // pred_fallthru
    _
  // Predicated region
  $region42: #{logistic_regression_forward.1} parent=0 // pred_check
    _
  $region43: #{logistic_regression_forward.1} parent=0 // pred_check_branch
    %1565 = sbr.rel (0) target = $region45
  $region44: #{logistic_regression_forward.1} parent=0 // pred_region
    _
  $region45: #{logistic_regression_forward.1} parent=0 // pred_fallthru
    _

</llo_original>
